<compile_context>
chip_gen: v5e
topology: v5e:2x2
jax: 0.10.0
libtpu: 0.0.40
codegen_flags: <defaults>
</compile_context>

<pallas_src>
import numpy as np
import jax
import jax.numpy as jnp
from jax import lax
from jax.experimental import pallas as pl
from jax.experimental.pallas import tpu as pltpu


# ---------------------------------------------------------------------------
# Trace-time weight folding / packing (tiny XLA ops, done once per call)
# ---------------------------------------------------------------------------
def _prep_weights(params, C, W):
    K1, K2 = params["K1"], params["K2"]
    P1, P2 = K1 // 2, K2 // 2
    W1 = W + 2 * P1 - K1 + 1          # firstconv output width
    Wp = (W1 - 8) // 8 + 1            # AvgPool(1,8), floor mode
    Wd = Wp + 2 * P2 - K2 + 1         # depthwise "same" conv output width
    Wf = (Wd - 4) // 4 + 1            # AvgPool(1,4), floor mode
    D = C - 1
    RM = 32 * (C - 1)                 # max rows over branches (Cd = C-1)
    NM = (C - 1) * Wd                 # max pointwise columns over branches

    # firstconv weights with BN0 folded, tiled per spatial row (row = c*16+o)
    w1rows = jnp.tile(params["w1"] * params["bn0_scale"][:, None], (C, 1))
    b0rows = jnp.tile(params["bn0_shift"][:, None], (C, 1))

    # AvgPool(1,8) matrix with P2 zero border columns (the border doubles as
    # the zero padding of the "same" depthwise conv -> no in-kernel staging).
    ppad_np = np.zeros((8 * Wp, Wp + 2 * P2), np.float32)
    for u in range(Wp):
        ppad_np[8 * u:8 * u + 8, P2 + u] = 1.0 / 8.0
    ppad = jnp.asarray(ppad_np)

    dcw_cols, ws_cols, wpc_cols, b2_cols, g_cols = [], [], [], [], []
    fc_w = params["fc_w"]
    off = 0
    for i, bp in enumerate(params["branches"]):
        d = i + 1
        Cd = C - d
        R2 = 32 * Cd
        wd_f = bp["wd"] * bp["bn1_scale"][:, None]            # (32, 2)
        sh1 = bp["bn1_shift"][:, None]                        # (32, 1)

        def eo_rows(m, _Cd=Cd):
            # (32, n) -> (32*Cd, n): [even chans tiled per row | odd chans tiled]
            return jnp.concatenate([jnp.tile(m[0::2], (_Cd, 1)),
                                    jnp.tile(m[1::2], (_Cd, 1))], axis=0)

        dcw = jnp.concatenate([eo_rows(wd_f[:, 0:1]), eo_rows(wd_f[:, 1:2]),
                               eo_rows(sh1)], axis=1)          # (R2, 3)
        ws = eo_rows(bp["wsep"])                               # (R2, K2)
        pad_r = RM - R2
        dcw_cols.append(jnp.pad(dcw, ((0, pad_r), (0, 0))))
        ws_cols.append(jnp.pad(ws, ((0, pad_r), (0, 0))))

        # pointwise 1x1 with BN2 scale folded; columns permuted to [even|odd]
        wpc = jnp.concatenate([bp["wpt"][:, 0::2], bp["wpt"][:, 1::2]],
                              axis=1) * bp["bn2_scale"][:, None]   # (32, 32)
        wpc_cols.append(wpc)
        b2_cols.append(bp["bn2_shift"][:, None])                   # (32, 1)

        # AvgPool(1,4) + this branch's Linear slice folded into one weight g
        n_feat = 32 * Cd * Wf
        fcw = fc_w[off:off + n_feat, 0].reshape(32, Cd, Wf)
        off += n_feat
        g3 = jnp.zeros((32, Cd, Wd), jnp.float32)
        g3 = g3.at[:, :, :4 * Wf].set(jnp.repeat(fcw, 4, axis=-1) * 0.25)
        g_cols.append(jnp.pad(g3.reshape(32, Cd * Wd),
                              ((0, 0), (0, NM - Cd * Wd))))
    assert off == fc_w.shape[0]

    packed = (w1rows, b0rows, ppad,
              jnp.concatenate(dcw_cols, axis=1),    # (RM, 3*D)
              jnp.concatenate(ws_cols, axis=1),     # (RM, D*K2)
              jnp.concatenate(wpc_cols, axis=1),    # (32, 32*D)
              jnp.concatenate(b2_cols, axis=1),     # (32, D)
              jnp.concatenate(g_cols, axis=1))      # (32, D*NM)
    dims = dict(K1=K1, K2=K2, P1=P1, P2=P2, W1=W1, Wp=Wp, Wd=Wd, Wf=Wf,
                D=D, RM=RM, NM=NM)
    return packed, dims


# ---------------------------------------------------------------------------
# Fused forward: one pallas_call, grid over the batch
# ---------------------------------------------------------------------------
def eegnet_forward(x, params):
    B, _, C, W = x.shape
    packed, dims = _prep_weights(params, C, W)
    (w1rows, b0rows, ppad, dcw_all, ws_all, wpc_all, b2_all, g_all) = packed
    K1, K2 = dims["K1"], dims["K2"]
    P1, P2 = dims["P1"], dims["P2"]
    W1, Wp, Wd = dims["W1"], dims["Wp"], dims["Wd"]
    D, RM, NM = dims["D"], dims["RM"], dims["NM"]
    Wpad = W + 2 * P1
    Wpool = 8 * Wp

    xpad = jnp.pad(x[:, 0], ((0, 0), (0, 0), (P1, P1)))        # (B, C, Wpad)

    def kernel(x_ref, w1_ref, b0_ref, pp_ref, dcw_ref, ws_ref, wpc_ref,
               b2_ref, g_ref, out_ref):
        xp = x_ref[...]                  # (C, Wpad)
        w1r = w1_ref[...]                # (16*C, K1)  BN0 scale folded
        b0r = b0_ref[...]                # (16*C, 1)
        pp = pp_ref[...]                 # (8*Wp, Wp + 2*P2)
        dcw = dcw_ref[...]               # (RM, 3*D)
        wsa = ws_ref[...]                # (RM, D*K2)
        wpca = wpc_ref[...]              # (32, 32*D)
        b2a = b2_ref[...]                # (32, D)
        ga = g_ref[...]                  # (32, D*NM)

        # ---- firstconv + BN0: h2[c*16 + o, t], time lane-dense (W1 lanes) ----
        xcat = jnp.concatenate(
            [jnp.broadcast_to(xp[c:c + 1, :], (16, Wpad)) for c in range(C)],
            axis=0)                                              # (16*C, Wpad)
        h2 = w1r[:, 0:1] * xcat[:, 0:W1]
        for k in range(1, K1):
            h2 = h2 + w1r[:, k:k + 1] * xcat[:, k:k + W1]
        h2 = h2 + b0r                                            # (16*C, W1)

        def lanecat(parts):
            return parts[0] if len(parts) == 1 else jnp.concatenate(parts, axis=1)

        total = jnp.zeros((1, 1), jnp.float32)
        for i in range(D):                                       # static unroll
            d = i + 1
            Cd = C - d
            R2 = 32 * Cd
            # grouped (2,1) depthconv (BN1 folded) + ReLU
            # rows: [even output channels (c-major) | odd output channels]
            top = h2[0:16 * Cd, :]
            bot = h2[16 * d:16 * (d + Cd), :]
            tcat = jnp.concatenate([top, top], axis=0)
            bcat = jnp.concatenate([bot, bot], axis=0)
            z = jnp.maximum(dcw[:R2, 3 * i:3 * i + 1] * tcat
                            + dcw[:R2, 3 * i + 1:3 * i + 2] * bcat
                            + dcw[:R2, 3 * i + 2:3 * i + 3], 0.0)  # (R2, W1)

            # AvgPool(1,8) (+ zero borders for the "same" depthwise conv):
            # one MXU matmul against a constant pooling matrix.
            zp = jnp.dot(z[:, 0:Wpool], pp,
                         preferred_element_type=jnp.float32)       # (R2, Wp+2*P2)

            # depthwise (1, K2) temporal conv taps (per-row weights)
            wsi = wsa[:R2, i * K2:(i + 1) * K2]
            q = wsi[:, 0:1] * zp[:, 0:Wd]
            for k in range(1, K2):
                q = q + wsi[:, k:k + 1] * zp[:, k:k + Wd]           # (R2, Wd)

            # ONE pointwise (1x1 + BN2) matmul per branch:
            # gather rows per spatial row c (cheap static slices + lane concat)
            rhs_e = lanecat([q[c * 16:(c + 1) * 16, :] for c in range(Cd)])
            rhs_o = lanecat([q[16 * Cd + c * 16:16 * Cd + (c + 1) * 16, :]
                             for c in range(Cd)])
            rhs = jnp.concatenate([rhs_e, rhs_o], axis=0)           # (32, Cd*Wd)
            y = jnp.maximum(
                jnp.dot(wpca[:, 32 * i:32 * (i + 1)], rhs,
                        preferred_element_type=jnp.float32)
                + b2a[:, i:i + 1], 0.0)                             # (32, Cd*Wd)

            # AvgPool(1,4) + fc slice folded into g -> multiply + reduce
            gi = ga[:, i * NM:i * NM + Cd * Wd]
            r = jnp.sum(y * gi, axis=1, keepdims=True)              # (32, 1)
            total = total + jnp.sum(r, axis=0, keepdims=True)       # (1, 1)

        out_ref[...] = jnp.broadcast_to(total, (1, 128))            # lane-dense

    out = pl.pallas_call(
        kernel,
        out_shape=jax.ShapeDtypeStruct((B, 1, 128), jnp.float32),
        grid=(B,),
        in_specs=[
            pl.BlockSpec((None, C, Wpad), lambda b: (b, 0, 0)),
            pl.BlockSpec((16 * C, K1), lambda b: (0, 0)),
            pl.BlockSpec((16 * C, 1), lambda b: (0, 0)),
            pl.BlockSpec((Wpool, Wp + 2 * P2), lambda b: (0, 0)),
            pl.BlockSpec((RM, 3 * D), lambda b: (0, 0)),
            pl.BlockSpec((RM, D * K2), lambda b: (0, 0)),
            pl.BlockSpec((32, 32 * D), lambda b: (0, 0)),
            pl.BlockSpec((32, D), lambda b: (0, 0)),
            pl.BlockSpec((32, D * NM), lambda b: (0, 0)),
        ],
        out_specs=pl.BlockSpec((None, 1, 128), lambda b: (b, 0, 0)),
        compiler_params=pltpu.CompilerParams(
            dimension_semantics=("parallel",)),
    )(xpad, w1rows, b0rows, ppad, dcw_all, ws_all, wpc_all, b2_all, g_all)

    return out[:, 0, 0] + params["fc_b"][0]


# ---------------------------------------------------------------------------
# Deterministic parameter init (BatchNorm folded into eval-mode scale/shift)
# ---------------------------------------------------------------------------
def init_params(key, in_channels, in_features, fs):
    K1, K2 = fs // 2, fs // 4
    D = in_channels - 1
    eps = 1e-5

    def bn_stats(k, n):
        k1, k2, k3, k4 = jax.random.split(k, 4)
        gamma = 1.0 + 0.1 * jax.random.normal(k1, (n,), jnp.float32)
        beta = 0.1 * jax.random.normal(k2, (n,), jnp.float32)
        mean = 0.1 * jax.random.normal(k3, (n,), jnp.float32)
        var = 0.5 + 0.5 * jax.random.uniform(k4, (n,), jnp.float32)
        scale = gamma * lax.rsqrt(var + eps)
        shift = beta - mean * scale
        return scale, shift

    ki = iter(jax.random.split(key, 4 + 5 * D))
    w1 = 0.1 * jax.random.normal(next(ki), (16, K1), jnp.float32)
    bn0_scale, bn0_shift = bn_stats(next(ki), 16)

    branches = []
    for _ in range(D):
        wd = 0.2 * jax.random.normal(next(ki), (32, 2), jnp.float32)
        bn1_scale, bn1_shift = bn_stats(next(ki), 32)
        wsep = 0.2 * jax.random.normal(next(ki), (32, K2), jnp.float32)
        wpt = 0.15 * jax.random.normal(next(ki), (32, 32), jnp.float32)
        bn2_scale, bn2_shift = bn_stats(next(ki), 32)
        branches.append(dict(wd=wd, bn1_scale=bn1_scale, bn1_shift=bn1_shift,
                             wsep=wsep, wpt=wpt,
                             bn2_scale=bn2_scale, bn2_shift=bn2_shift))

    f1 = (in_features - 4) // 4 + 1
    f2 = (f1 - 8) // 8 + 1
    fc_in = int(32 * (1 + D) * D / 2 * f2)          # same formula as __init__
    fc_w = 0.05 * jax.random.normal(next(ki), (fc_in, 1), jnp.float32)
    fc_b = 0.05 * jax.random.normal(next(ki), (1,), jnp.float32)

    return dict(K1=K1, K2=K2, w1=w1, bn0_scale=bn0_scale, bn0_shift=bn0_shift,
                branches=branches, fc_w=fc_w, fc_b=fc_b)


# ---------------------------------------------------------------------------
# Pure-JAX (XLA) reference reproducing the PyTorch NCHW forward, for checking
# ---------------------------------------------------------------------------
def reference_forward(x, params):
    K1, K2 = params["K1"], params["K2"]
    P1, P2 = K1 // 2, K2 // 2
    B = x.shape[0]
    dn = ("NCHW", "OIHW", "NCHW")
    prec = lax.Precision.HIGHEST

    def bn(z, scale, shift):
        return z * scale[None, :, None, None] + shift[None, :, None, None]

    def avgpool_w(z, k):
        return lax.reduce_window(z, 0.0, lax.add, (1, 1, 1, k), (1, 1, 1, k),
                                 "VALID") / k

    h = lax.conv_general_dilated(x, params["w1"].reshape(16, 1, 1, K1), (1, 1),
                                 [(0, 0), (P1, P1)], dimension_numbers=dn,
                                 precision=prec)
    h = bn(h, params["bn0_scale"], params["bn0_shift"])

    outs = []
    for i, bp in enumerate(params["branches"]):
        d = i + 1
        a = lax.conv_general_dilated(h, bp["wd"].reshape(32, 1, 2, 1), (1, 1),
                                     [(0, 0), (0, 0)], rhs_dilation=(d, 1),
                                     dimension_numbers=dn,
                                     feature_group_count=16, precision=prec)
        a = jnp.maximum(bn(a, bp["bn1_scale"], bp["bn1_shift"]), 0.0)
        a = avgpool_w(a, 8)
        s = lax.conv_general_dilated(a, bp["wsep"].reshape(32, 1, 1, K2), (1, 1),
                                     [(0, 0), (P2, P2)], dimension_numbers=dn,
                                     feature_group_count=32, precision=prec)
        s = lax.conv_general_dilated(s, bp["wpt"].reshape(32, 32, 1, 1), (1, 1),
                                     [(0, 0), (0, 0)], dimension_numbers=dn,
                                     precision=prec)
        s = jnp.maximum(bn(s, bp["bn2_scale"], bp["bn2_shift"]), 0.0)
        s = avgpool_w(s, 4)
        outs.append(s.reshape(B, -1))
    cat = jnp.concatenate(outs, axis=1)
    y = jnp.matmul(cat, params["fc_w"], precision=prec) + params["fc_b"]
    return y.reshape(-1)


if __name__ == "__main__":
    # Small shapes: 4 EEG rows (-> 3 dilation branches), 64 time samples, fs=16
    # so KS1=8, KS2=4; fc in_features formula == actual flattened size (384).
    in_channels, in_features, fs, batch = 4, 64, 16, 2

    key = jax.random.PRNGKey(0)
    kx, kp = jax.random.split(key)
    x = jax.random.normal(kx, (batch, 1, in_channels, in_features), jnp.float32)
    params = init_params(kp, in_channels, in_features, fs)

    fwd = jax.jit(lambda xx: eegnet_forward(xx, params))
    out = jax.block_until_ready(fwd(x))
    assert out.shape == (batch,)

    ref = jax.block_until_ready(reference_forward(x, params))
    # tolerance allows for MXU f32 pass rounding in the in-kernel matmuls
    np.testing.assert_allclose(np.asarray(out), np.asarray(ref),
                               rtol=1e-2, atol=1e-2)

    print("KERNEL_OK")
</pallas_src>

<mosaic_0001>
module attributes {stable_mosaic.version = 11 : i64} {
  func.func @kernel(%arg0: i32, %arg1: memref<1x4x72xf32, #tpu.memory_space<vmem>>, %arg2: memref<64x8xf32, #tpu.memory_space<vmem>>, %arg3: memref<64x1xf32, #tpu.memory_space<vmem>>, %arg4: memref<64x12xf32, #tpu.memory_space<vmem>>, %arg5: memref<96x9xf32, #tpu.memory_space<vmem>>, %arg6: memref<96x12xf32, #tpu.memory_space<vmem>>, %arg7: memref<32x96xf32, #tpu.memory_space<vmem>>, %arg8: memref<32x3xf32, #tpu.memory_space<vmem>>, %arg9: memref<32x81xf32, #tpu.memory_space<vmem>>, %arg10: memref<1x1x128xf32, #tpu.memory_space<vmem>>) attributes {dimension_semantics = [#tpu.dimension_semantics<parallel>], iteration_bounds = array<i64: 2>, scalar_prefetch = 0 : i64, scratch_operands = 0 : i64, tpu.core_type = #tpu.core_type<tc>, window_params = [{transform_indices = @transform_0, window_bounds = array<i64: 1, 4, 72>}, {pipeline_mode = #tpu.pipeline_mode<synchronous>, transform_indices = @transform_1, window_bounds = array<i64: 64, 8>}, {pipeline_mode = #tpu.pipeline_mode<synchronous>, transform_indices = @transform_2, window_bounds = array<i64: 64, 1>}, {pipeline_mode = #tpu.pipeline_mode<synchronous>, transform_indices = @transform_3, window_bounds = array<i64: 64, 12>}, {pipeline_mode = #tpu.pipeline_mode<synchronous>, transform_indices = @transform_4, window_bounds = array<i64: 96, 9>}, {pipeline_mode = #tpu.pipeline_mode<synchronous>, transform_indices = @transform_5, window_bounds = array<i64: 96, 12>}, {pipeline_mode = #tpu.pipeline_mode<synchronous>, transform_indices = @transform_6, window_bounds = array<i64: 32, 96>}, {pipeline_mode = #tpu.pipeline_mode<synchronous>, transform_indices = @transform_7, window_bounds = array<i64: 32, 3>}, {pipeline_mode = #tpu.pipeline_mode<synchronous>, transform_indices = @transform_8, window_bounds = array<i64: 32, 81>}, {transform_indices = @transform_9, window_bounds = array<i64: 1, 1, 128>}]} {
    %c0 = arith.constant 0 : index
    %c0_0 = arith.constant 0 : index
    %c0_1 = arith.constant 0 : index
    %0 = vector.load %arg1[%c0, %c0_0, %c0_1] : memref<1x4x72xf32, #tpu.memory_space<vmem>>, vector<1x4x72xf32>
    %1 = vector.shape_cast %0 : vector<1x4x72xf32> to vector<4x72xf32>
    %c0_2 = arith.constant 0 : index
    %c0_3 = arith.constant 0 : index
    %2 = vector.load %arg2[%c0_2, %c0_3] : memref<64x8xf32, #tpu.memory_space<vmem>>, vector<64x8xf32>
    %c0_4 = arith.constant 0 : index
    %c0_5 = arith.constant 0 : index
    %3 = vector.load %arg3[%c0_4, %c0_5] : memref<64x1xf32, #tpu.memory_space<vmem>>, vector<64x1xf32>
    %c0_6 = arith.constant 0 : index
    %c0_7 = arith.constant 0 : index
    %4 = vector.load %arg4[%c0_6, %c0_7] : memref<64x12xf32, #tpu.memory_space<vmem>>, vector<64x12xf32>
    %c0_8 = arith.constant 0 : index
    %c0_9 = arith.constant 0 : index
    %5 = vector.load %arg5[%c0_8, %c0_9] : memref<96x9xf32, #tpu.memory_space<vmem>>, vector<96x9xf32>
    %c0_10 = arith.constant 0 : index
    %c0_11 = arith.constant 0 : index
    %6 = vector.load %arg6[%c0_10, %c0_11] : memref<96x12xf32, #tpu.memory_space<vmem>>, vector<96x12xf32>
    %c0_12 = arith.constant 0 : index
    %c0_13 = arith.constant 0 : index
    %7 = vector.load %arg7[%c0_12, %c0_13] : memref<32x96xf32, #tpu.memory_space<vmem>>, vector<32x96xf32>
    %c0_14 = arith.constant 0 : index
    %c0_15 = arith.constant 0 : index
    %8 = vector.load %arg8[%c0_14, %c0_15] : memref<32x3xf32, #tpu.memory_space<vmem>>, vector<32x3xf32>
    %c0_16 = arith.constant 0 : index
    %c0_17 = arith.constant 0 : index
    %9 = vector.load %arg9[%c0_16, %c0_17] : memref<32x81xf32, #tpu.memory_space<vmem>>, vector<32x81xf32>
    %10 = vector.extract_strided_slice %1 {offsets = [0, 0], sizes = [1, 72], strides = [1, 1]} : vector<4x72xf32> to vector<1x72xf32>
    %11 = vector.shape_cast %10 : vector<1x72xf32> to vector<1x72xf32>
    %12 = vector.broadcast %11 : vector<1x72xf32> to vector<16x72xf32>
    %13 = vector.extract_strided_slice %1 {offsets = [1, 0], sizes = [1, 72], strides = [1, 1]} : vector<4x72xf32> to vector<1x72xf32>
    %14 = vector.shape_cast %13 : vector<1x72xf32> to vector<1x72xf32>
    %15 = vector.broadcast %14 : vector<1x72xf32> to vector<16x72xf32>
    %16 = vector.extract_strided_slice %1 {offsets = [2, 0], sizes = [1, 72], strides = [1, 1]} : vector<4x72xf32> to vector<1x72xf32>
    %17 = vector.shape_cast %16 : vector<1x72xf32> to vector<1x72xf32>
    %18 = vector.broadcast %17 : vector<1x72xf32> to vector<16x72xf32>
    %19 = vector.extract_strided_slice %1 {offsets = [3, 0], sizes = [1, 72], strides = [1, 1]} : vector<4x72xf32> to vector<1x72xf32>
    %20 = vector.shape_cast %19 : vector<1x72xf32> to vector<1x72xf32>
    %21 = vector.broadcast %20 : vector<1x72xf32> to vector<16x72xf32>
    %22 = tpu.concatenate %12, %15, %18, %21 in 0 : vector<16x72xf32>, vector<16x72xf32>, vector<16x72xf32>, vector<16x72xf32> -> vector<64x72xf32>
    %23 = vector.extract_strided_slice %2 {offsets = [0, 0], sizes = [64, 1], strides = [1, 1]} : vector<64x8xf32> to vector<64x1xf32>
    %24 = vector.extract_strided_slice %22 {offsets = [0, 0], sizes = [64, 65], strides = [1, 1]} : vector<64x72xf32> to vector<64x65xf32>
    %25 = vector.broadcast %23 : vector<64x1xf32> to vector<64x65xf32>
    %26 = arith.mulf %25, %24 : vector<64x65xf32>
    %27 = vector.extract_strided_slice %2 {offsets = [0, 1], sizes = [64, 1], strides = [1, 1]} : vector<64x8xf32> to vector<64x1xf32>
    %28 = vector.extract_strided_slice %22 {offsets = [0, 1], sizes = [64, 65], strides = [1, 1]} : vector<64x72xf32> to vector<64x65xf32>
    %29 = vector.broadcast %27 : vector<64x1xf32> to vector<64x65xf32>
    %30 = arith.mulf %29, %28 : vector<64x65xf32>
    %31 = arith.addf %26, %30 : vector<64x65xf32>
    %32 = vector.extract_strided_slice %2 {offsets = [0, 2], sizes = [64, 1], strides = [1, 1]} : vector<64x8xf32> to vector<64x1xf32>
    %33 = vector.extract_strided_slice %22 {offsets = [0, 2], sizes = [64, 65], strides = [1, 1]} : vector<64x72xf32> to vector<64x65xf32>
    %34 = vector.broadcast %32 : vector<64x1xf32> to vector<64x65xf32>
    %35 = arith.mulf %34, %33 : vector<64x65xf32>
    %36 = arith.addf %31, %35 : vector<64x65xf32>
    %37 = vector.extract_strided_slice %2 {offsets = [0, 3], sizes = [64, 1], strides = [1, 1]} : vector<64x8xf32> to vector<64x1xf32>
    %38 = vector.extract_strided_slice %22 {offsets = [0, 3], sizes = [64, 65], strides = [1, 1]} : vector<64x72xf32> to vector<64x65xf32>
    %39 = vector.broadcast %37 : vector<64x1xf32> to vector<64x65xf32>
    %40 = arith.mulf %39, %38 : vector<64x65xf32>
    %41 = arith.addf %36, %40 : vector<64x65xf32>
    %42 = vector.extract_strided_slice %2 {offsets = [0, 4], sizes = [64, 1], strides = [1, 1]} : vector<64x8xf32> to vector<64x1xf32>
    %43 = vector.extract_strided_slice %22 {offsets = [0, 4], sizes = [64, 65], strides = [1, 1]} : vector<64x72xf32> to vector<64x65xf32>
    %44 = vector.broadcast %42 : vector<64x1xf32> to vector<64x65xf32>
    %45 = arith.mulf %44, %43 : vector<64x65xf32>
    %46 = arith.addf %41, %45 : vector<64x65xf32>
    %47 = vector.extract_strided_slice %2 {offsets = [0, 5], sizes = [64, 1], strides = [1, 1]} : vector<64x8xf32> to vector<64x1xf32>
    %48 = vector.extract_strided_slice %22 {offsets = [0, 5], sizes = [64, 65], strides = [1, 1]} : vector<64x72xf32> to vector<64x65xf32>
    %49 = vector.broadcast %47 : vector<64x1xf32> to vector<64x65xf32>
    %50 = arith.mulf %49, %48 : vector<64x65xf32>
    %51 = arith.addf %46, %50 : vector<64x65xf32>
    %52 = vector.extract_strided_slice %2 {offsets = [0, 6], sizes = [64, 1], strides = [1, 1]} : vector<64x8xf32> to vector<64x1xf32>
    %53 = vector.extract_strided_slice %22 {offsets = [0, 6], sizes = [64, 65], strides = [1, 1]} : vector<64x72xf32> to vector<64x65xf32>
    %54 = vector.broadcast %52 : vector<64x1xf32> to vector<64x65xf32>
    %55 = arith.mulf %54, %53 : vector<64x65xf32>
    %56 = arith.addf %51, %55 : vector<64x65xf32>
    %57 = vector.extract_strided_slice %2 {offsets = [0, 7], sizes = [64, 1], strides = [1, 1]} : vector<64x8xf32> to vector<64x1xf32>
    %58 = vector.extract_strided_slice %22 {offsets = [0, 7], sizes = [64, 65], strides = [1, 1]} : vector<64x72xf32> to vector<64x65xf32>
    %59 = vector.broadcast %57 : vector<64x1xf32> to vector<64x65xf32>
    %60 = arith.mulf %59, %58 : vector<64x65xf32>
    %61 = arith.addf %56, %60 : vector<64x65xf32>
    %62 = vector.broadcast %3 : vector<64x1xf32> to vector<64x65xf32>
    %63 = arith.addf %61, %62 : vector<64x65xf32>
    %cst = arith.constant 0.000000e+00 : f32
    %64 = vector.broadcast %cst : f32 to vector<1x1xf32>
    %65 = vector.extract_strided_slice %63 {offsets = [0, 0], sizes = [48, 65], strides = [1, 1]} : vector<64x65xf32> to vector<48x65xf32>
    %66 = vector.extract_strided_slice %63 {offsets = [16, 0], sizes = [48, 65], strides = [1, 1]} : vector<64x65xf32> to vector<48x65xf32>
    %67 = tpu.concatenate %65, %65 in 0 : vector<48x65xf32>, vector<48x65xf32> -> vector<96x65xf32>
    %68 = tpu.concatenate %66, %66 in 0 : vector<48x65xf32>, vector<48x65xf32> -> vector<96x65xf32>
    %69 = vector.extract_strided_slice %5 {offsets = [0, 0], sizes = [96, 1], strides = [1, 1]} : vector<96x9xf32> to vector<96x1xf32>
    %70 = vector.broadcast %69 : vector<96x1xf32> to vector<96x65xf32>
    %71 = arith.mulf %70, %67 : vector<96x65xf32>
    %72 = vector.extract_strided_slice %5 {offsets = [0, 1], sizes = [96, 1], strides = [1, 1]} : vector<96x9xf32> to vector<96x1xf32>
    %73 = vector.broadcast %72 : vector<96x1xf32> to vector<96x65xf32>
    %74 = arith.mulf %73, %68 : vector<96x65xf32>
    %75 = arith.addf %71, %74 : vector<96x65xf32>
    %76 = vector.extract_strided_slice %5 {offsets = [0, 2], sizes = [96, 1], strides = [1, 1]} : vector<96x9xf32> to vector<96x1xf32>
    %77 = vector.broadcast %76 : vector<96x1xf32> to vector<96x65xf32>
    %78 = arith.addf %75, %77 : vector<96x65xf32>
    %cst_18 = arith.constant 0.000000e+00 : f32
    %79 = vector.broadcast %cst_18 : f32 to vector<96x65xf32>
    %80 = arith.maximumf %78, %79 : vector<96x65xf32>
    %81 = vector.extract_strided_slice %80 {offsets = [0, 0], sizes = [96, 64], strides = [1, 1]} : vector<96x65xf32> to vector<96x64xf32>
    %cst_19 = arith.constant dense<0.000000e+00> : vector<96x12xf32>
    %82 = tpu.matmul %81, %4, %cst_19 {dimension_numbers = #tpu.dot_dimension_numbers<[1], [0], [0], [1], [0, 0, 1, 1], [], []>} : vector<96x64xf32>, vector<64x12xf32>, vector<96x12xf32> -> vector<96x12xf32>
    %83 = vector.extract_strided_slice %6 {offsets = [0, 0], sizes = [96, 4], strides = [1, 1]} : vector<96x12xf32> to vector<96x4xf32>
    %84 = vector.extract_strided_slice %83 {offsets = [0, 0], sizes = [96, 1], strides = [1, 1]} : vector<96x4xf32> to vector<96x1xf32>
    %85 = vector.extract_strided_slice %82 {offsets = [0, 0], sizes = [96, 9], strides = [1, 1]} : vector<96x12xf32> to vector<96x9xf32>
    %86 = vector.broadcast %84 : vector<96x1xf32> to vector<96x9xf32>
    %87 = arith.mulf %86, %85 : vector<96x9xf32>
    %88 = vector.extract_strided_slice %83 {offsets = [0, 1], sizes = [96, 1], strides = [1, 1]} : vector<96x4xf32> to vector<96x1xf32>
    %89 = vector.extract_strided_slice %82 {offsets = [0, 1], sizes = [96, 9], strides = [1, 1]} : vector<96x12xf32> to vector<96x9xf32>
    %90 = vector.broadcast %88 : vector<96x1xf32> to vector<96x9xf32>
    %91 = arith.mulf %90, %89 : vector<96x9xf32>
    %92 = arith.addf %87, %91 : vector<96x9xf32>
    %93 = vector.extract_strided_slice %83 {offsets = [0, 2], sizes = [96, 1], strides = [1, 1]} : vector<96x4xf32> to vector<96x1xf32>
    %94 = vector.extract_strided_slice %82 {offsets = [0, 2], sizes = [96, 9], strides = [1, 1]} : vector<96x12xf32> to vector<96x9xf32>
    %95 = vector.broadcast %93 : vector<96x1xf32> to vector<96x9xf32>
    %96 = arith.mulf %95, %94 : vector<96x9xf32>
    %97 = arith.addf %92, %96 : vector<96x9xf32>
    %98 = vector.extract_strided_slice %83 {offsets = [0, 3], sizes = [96, 1], strides = [1, 1]} : vector<96x4xf32> to vector<96x1xf32>
    %99 = vector.extract_strided_slice %82 {offsets = [0, 3], sizes = [96, 9], strides = [1, 1]} : vector<96x12xf32> to vector<96x9xf32>
    %100 = vector.broadcast %98 : vector<96x1xf32> to vector<96x9xf32>
    %101 = arith.mulf %100, %99 : vector<96x9xf32>
    %102 = arith.addf %97, %101 : vector<96x9xf32>
    %103 = vector.extract_strided_slice %102 {offsets = [0, 0], sizes = [16, 9], strides = [1, 1]} : vector<96x9xf32> to vector<16x9xf32>
    %104 = vector.extract_strided_slice %102 {offsets = [16, 0], sizes = [16, 9], strides = [1, 1]} : vector<96x9xf32> to vector<16x9xf32>
    %105 = vector.extract_strided_slice %102 {offsets = [32, 0], sizes = [16, 9], strides = [1, 1]} : vector<96x9xf32> to vector<16x9xf32>
    %106 = tpu.concatenate %103, %104, %105 in 1 : vector<16x9xf32>, vector<16x9xf32>, vector<16x9xf32> -> vector<16x27xf32>
    %107 = vector.extract_strided_slice %102 {offsets = [48, 0], sizes = [16, 9], strides = [1, 1]} : vector<96x9xf32> to vector<16x9xf32>
    %108 = vector.extract_strided_slice %102 {offsets = [64, 0], sizes = [16, 9], strides = [1, 1]} : vector<96x9xf32> to vector<16x9xf32>
    %109 = vector.extract_strided_slice %102 {offsets = [80, 0], sizes = [16, 9], strides = [1, 1]} : vector<96x9xf32> to vector<16x9xf32>
    %110 = tpu.concatenate %107, %108, %109 in 1 : vector<16x9xf32>, vector<16x9xf32>, vector<16x9xf32> -> vector<16x27xf32>
    %111 = tpu.concatenate %106, %110 in 0 : vector<16x27xf32>, vector<16x27xf32> -> vector<32x27xf32>
    %112 = vector.extract_strided_slice %7 {offsets = [0, 0], sizes = [32, 32], strides = [1, 1]} : vector<32x96xf32> to vector<32x32xf32>
    %cst_20 = arith.constant dense<0.000000e+00> : vector<32x27xf32>
    %113 = tpu.matmul %112, %111, %cst_20 {dimension_numbers = #tpu.dot_dimension_numbers<[1], [0], [0], [1], [0, 0, 1, 1], [], []>} : vector<32x32xf32>, vector<32x27xf32>, vector<32x27xf32> -> vector<32x27xf32>
    %114 = vector.extract_strided_slice %8 {offsets = [0, 0], sizes = [32, 1], strides = [1, 1]} : vector<32x3xf32> to vector<32x1xf32>
    %115 = vector.broadcast %114 : vector<32x1xf32> to vector<32x27xf32>
    %116 = arith.addf %113, %115 : vector<32x27xf32>
    %cst_21 = arith.constant 0.000000e+00 : f32
    %117 = vector.broadcast %cst_21 : f32 to vector<32x27xf32>
    %118 = arith.maximumf %116, %117 : vector<32x27xf32>
    %119 = vector.extract_strided_slice %9 {offsets = [0, 0], sizes = [32, 27], strides = [1, 1]} : vector<32x81xf32> to vector<32x27xf32>
    %120 = arith.mulf %118, %119 : vector<32x27xf32>
    %cst_22 = arith.constant dense<0.000000e+00> : vector<32xf32>
    %121 = vector.multi_reduction <add>, %120, %cst_22 [1] : vector<32x27xf32> to vector<32xf32>
    %122 = vector.shape_cast %121 : vector<32xf32> to vector<32x1xf32>
    %cst_23 = arith.constant dense<0.000000e+00> : vector<1xf32>
    %123 = vector.multi_reduction <add>, %122, %cst_23 [0] : vector<32x1xf32> to vector<1xf32>
    %124 = vector.shape_cast %123 : vector<1xf32> to vector<1x1xf32>
    %125 = arith.addf %64, %124 : vector<1x1xf32>
    %126 = vector.extract_strided_slice %63 {offsets = [0, 0], sizes = [32, 65], strides = [1, 1]} : vector<64x65xf32> to vector<32x65xf32>
    %127 = vector.extract_strided_slice %63 {offsets = [32, 0], sizes = [32, 65], strides = [1, 1]} : vector<64x65xf32> to vector<32x65xf32>
    %128 = tpu.concatenate %126, %126 in 0 : vector<32x65xf32>, vector<32x65xf32> -> vector<64x65xf32>
    %129 = tpu.concatenate %127, %127 in 0 : vector<32x65xf32>, vector<32x65xf32> -> vector<64x65xf32>
    %130 = vector.extract_strided_slice %5 {offsets = [0, 3], sizes = [64, 1], strides = [1, 1]} : vector<96x9xf32> to vector<64x1xf32>
    %131 = vector.broadcast %130 : vector<64x1xf32> to vector<64x65xf32>
    %132 = arith.mulf %131, %128 : vector<64x65xf32>
    %133 = vector.extract_strided_slice %5 {offsets = [0, 4], sizes = [64, 1], strides = [1, 1]} : vector<96x9xf32> to vector<64x1xf32>
    %134 = vector.broadcast %133 : vector<64x1xf32> to vector<64x65xf32>
    %135 = arith.mulf %134, %129 : vector<64x65xf32>
    %136 = arith.addf %132, %135 : vector<64x65xf32>
    %137 = vector.extract_strided_slice %5 {offsets = [0, 5], sizes = [64, 1], strides = [1, 1]} : vector<96x9xf32> to vector<64x1xf32>
    %138 = vector.broadcast %137 : vector<64x1xf32> to vector<64x65xf32>
    %139 = arith.addf %136, %138 : vector<64x65xf32>
    %cst_24 = arith.constant 0.000000e+00 : f32
    %140 = vector.broadcast %cst_24 : f32 to vector<64x65xf32>
    %141 = arith.maximumf %139, %140 : vector<64x65xf32>
    %142 = vector.extract_strided_slice %141 {offsets = [0, 0], sizes = [64, 64], strides = [1, 1]} : vector<64x65xf32> to vector<64x64xf32>
    %cst_25 = arith.constant dense<0.000000e+00> : vector<64x12xf32>
    %143 = tpu.matmul %142, %4, %cst_25 {dimension_numbers = #tpu.dot_dimension_numbers<[1], [0], [0], [1], [0, 0, 1, 1], [], []>} : vector<64x64xf32>, vector<64x12xf32>, vector<64x12xf32> -> vector<64x12xf32>
    %144 = vector.extract_strided_slice %6 {offsets = [0, 4], sizes = [64, 4], strides = [1, 1]} : vector<96x12xf32> to vector<64x4xf32>
    %145 = vector.extract_strided_slice %144 {offsets = [0, 0], sizes = [64, 1], strides = [1, 1]} : vector<64x4xf32> to vector<64x1xf32>
    %146 = vector.extract_strided_slice %143 {offsets = [0, 0], sizes = [64, 9], strides = [1, 1]} : vector<64x12xf32> to vector<64x9xf32>
    %147 = vector.broadcast %145 : vector<64x1xf32> to vector<64x9xf32>
    %148 = arith.mulf %147, %146 : vector<64x9xf32>
    %149 = vector.extract_strided_slice %144 {offsets = [0, 1], sizes = [64, 1], strides = [1, 1]} : vector<64x4xf32> to vector<64x1xf32>
    %150 = vector.extract_strided_slice %143 {offsets = [0, 1], sizes = [64, 9], strides = [1, 1]} : vector<64x12xf32> to vector<64x9xf32>
    %151 = vector.broadcast %149 : vector<64x1xf32> to vector<64x9xf32>
    %152 = arith.mulf %151, %150 : vector<64x9xf32>
    %153 = arith.addf %148, %152 : vector<64x9xf32>
    %154 = vector.extract_strided_slice %144 {offsets = [0, 2], sizes = [64, 1], strides = [1, 1]} : vector<64x4xf32> to vector<64x1xf32>
    %155 = vector.extract_strided_slice %143 {offsets = [0, 2], sizes = [64, 9], strides = [1, 1]} : vector<64x12xf32> to vector<64x9xf32>
    %156 = vector.broadcast %154 : vector<64x1xf32> to vector<64x9xf32>
    %157 = arith.mulf %156, %155 : vector<64x9xf32>
    %158 = arith.addf %153, %157 : vector<64x9xf32>
    %159 = vector.extract_strided_slice %144 {offsets = [0, 3], sizes = [64, 1], strides = [1, 1]} : vector<64x4xf32> to vector<64x1xf32>
    %160 = vector.extract_strided_slice %143 {offsets = [0, 3], sizes = [64, 9], strides = [1, 1]} : vector<64x12xf32> to vector<64x9xf32>
    %161 = vector.broadcast %159 : vector<64x1xf32> to vector<64x9xf32>
    %162 = arith.mulf %161, %160 : vector<64x9xf32>
    %163 = arith.addf %158, %162 : vector<64x9xf32>
    %164 = vector.extract_strided_slice %163 {offsets = [0, 0], sizes = [16, 9], strides = [1, 1]} : vector<64x9xf32> to vector<16x9xf32>
    %165 = vector.extract_strided_slice %163 {offsets = [16, 0], sizes = [16, 9], strides = [1, 1]} : vector<64x9xf32> to vector<16x9xf32>
    %166 = tpu.concatenate %164, %165 in 1 : vector<16x9xf32>, vector<16x9xf32> -> vector<16x18xf32>
    %167 = vector.extract_strided_slice %163 {offsets = [32, 0], sizes = [16, 9], strides = [1, 1]} : vector<64x9xf32> to vector<16x9xf32>
    %168 = vector.extract_strided_slice %163 {offsets = [48, 0], sizes = [16, 9], strides = [1, 1]} : vector<64x9xf32> to vector<16x9xf32>
    %169 = tpu.concatenate %167, %168 in 1 : vector<16x9xf32>, vector<16x9xf32> -> vector<16x18xf32>
    %170 = tpu.concatenate %166, %169 in 0 : vector<16x18xf32>, vector<16x18xf32> -> vector<32x18xf32>
    %171 = vector.extract_strided_slice %7 {offsets = [0, 32], sizes = [32, 32], strides = [1, 1]} : vector<32x96xf32> to vector<32x32xf32>
    %cst_26 = arith.constant dense<0.000000e+00> : vector<32x18xf32>
    %172 = tpu.matmul %171, %170, %cst_26 {dimension_numbers = #tpu.dot_dimension_numbers<[1], [0], [0], [1], [0, 0, 1, 1], [], []>} : vector<32x32xf32>, vector<32x18xf32>, vector<32x18xf32> -> vector<32x18xf32>
    %173 = vector.extract_strided_slice %8 {offsets = [0, 1], sizes = [32, 1], strides = [1, 1]} : vector<32x3xf32> to vector<32x1xf32>
    %174 = vector.broadcast %173 : vector<32x1xf32> to vector<32x18xf32>
    %175 = arith.addf %172, %174 : vector<32x18xf32>
    %cst_27 = arith.constant 0.000000e+00 : f32
    %176 = vector.broadcast %cst_27 : f32 to vector<32x18xf32>
    %177 = arith.maximumf %175, %176 : vector<32x18xf32>
    %178 = vector.extract_strided_slice %9 {offsets = [0, 27], sizes = [32, 18], strides = [1, 1]} : vector<32x81xf32> to vector<32x18xf32>
    %179 = arith.mulf %177, %178 : vector<32x18xf32>
    %cst_28 = arith.constant dense<0.000000e+00> : vector<32xf32>
    %180 = vector.multi_reduction <add>, %179, %cst_28 [1] : vector<32x18xf32> to vector<32xf32>
    %181 = vector.shape_cast %180 : vector<32xf32> to vector<32x1xf32>
    %cst_29 = arith.constant dense<0.000000e+00> : vector<1xf32>
    %182 = vector.multi_reduction <add>, %181, %cst_29 [0] : vector<32x1xf32> to vector<1xf32>
    %183 = vector.shape_cast %182 : vector<1xf32> to vector<1x1xf32>
    %184 = arith.addf %125, %183 : vector<1x1xf32>
    %185 = vector.extract_strided_slice %63 {offsets = [0, 0], sizes = [16, 65], strides = [1, 1]} : vector<64x65xf32> to vector<16x65xf32>
    %186 = vector.extract_strided_slice %63 {offsets = [48, 0], sizes = [16, 65], strides = [1, 1]} : vector<64x65xf32> to vector<16x65xf32>
    %187 = tpu.concatenate %185, %185 in 0 : vector<16x65xf32>, vector<16x65xf32> -> vector<32x65xf32>
    %188 = tpu.concatenate %186, %186 in 0 : vector<16x65xf32>, vector<16x65xf32> -> vector<32x65xf32>
    %189 = vector.extract_strided_slice %5 {offsets = [0, 6], sizes = [32, 1], strides = [1, 1]} : vector<96x9xf32> to vector<32x1xf32>
    %190 = vector.broadcast %189 : vector<32x1xf32> to vector<32x65xf32>
    %191 = arith.mulf %190, %187 : vector<32x65xf32>
    %192 = vector.extract_strided_slice %5 {offsets = [0, 7], sizes = [32, 1], strides = [1, 1]} : vector<96x9xf32> to vector<32x1xf32>
    %193 = vector.broadcast %192 : vector<32x1xf32> to vector<32x65xf32>
    %194 = arith.mulf %193, %188 : vector<32x65xf32>
    %195 = arith.addf %191, %194 : vector<32x65xf32>
    %196 = vector.extract_strided_slice %5 {offsets = [0, 8], sizes = [32, 1], strides = [1, 1]} : vector<96x9xf32> to vector<32x1xf32>
    %197 = vector.broadcast %196 : vector<32x1xf32> to vector<32x65xf32>
    %198 = arith.addf %195, %197 : vector<32x65xf32>
    %cst_30 = arith.constant 0.000000e+00 : f32
    %199 = vector.broadcast %cst_30 : f32 to vector<32x65xf32>
    %200 = arith.maximumf %198, %199 : vector<32x65xf32>
    %201 = vector.extract_strided_slice %200 {offsets = [0, 0], sizes = [32, 64], strides = [1, 1]} : vector<32x65xf32> to vector<32x64xf32>
    %cst_31 = arith.constant dense<0.000000e+00> : vector<32x12xf32>
    %202 = tpu.matmul %201, %4, %cst_31 {dimension_numbers = #tpu.dot_dimension_numbers<[1], [0], [0], [1], [0, 0, 1, 1], [], []>} : vector<32x64xf32>, vector<64x12xf32>, vector<32x12xf32> -> vector<32x12xf32>
    %203 = vector.extract_strided_slice %6 {offsets = [0, 8], sizes = [32, 4], strides = [1, 1]} : vector<96x12xf32> to vector<32x4xf32>
    %204 = vector.extract_strided_slice %203 {offsets = [0, 0], sizes = [32, 1], strides = [1, 1]} : vector<32x4xf32> to vector<32x1xf32>
    %205 = vector.extract_strided_slice %202 {offsets = [0, 0], sizes = [32, 9], strides = [1, 1]} : vector<32x12xf32> to vector<32x9xf32>
    %206 = vector.broadcast %204 : vector<32x1xf32> to vector<32x9xf32>
    %207 = arith.mulf %206, %205 : vector<32x9xf32>
    %208 = vector.extract_strided_slice %203 {offsets = [0, 1], sizes = [32, 1], strides = [1, 1]} : vector<32x4xf32> to vector<32x1xf32>
    %209 = vector.extract_strided_slice %202 {offsets = [0, 1], sizes = [32, 9], strides = [1, 1]} : vector<32x12xf32> to vector<32x9xf32>
    %210 = vector.broadcast %208 : vector<32x1xf32> to vector<32x9xf32>
    %211 = arith.mulf %210, %209 : vector<32x9xf32>
    %212 = arith.addf %207, %211 : vector<32x9xf32>
    %213 = vector.extract_strided_slice %203 {offsets = [0, 2], sizes = [32, 1], strides = [1, 1]} : vector<32x4xf32> to vector<32x1xf32>
    %214 = vector.extract_strided_slice %202 {offsets = [0, 2], sizes = [32, 9], strides = [1, 1]} : vector<32x12xf32> to vector<32x9xf32>
    %215 = vector.broadcast %213 : vector<32x1xf32> to vector<32x9xf32>
    %216 = arith.mulf %215, %214 : vector<32x9xf32>
    %217 = arith.addf %212, %216 : vector<32x9xf32>
    %218 = vector.extract_strided_slice %203 {offsets = [0, 3], sizes = [32, 1], strides = [1, 1]} : vector<32x4xf32> to vector<32x1xf32>
    %219 = vector.extract_strided_slice %202 {offsets = [0, 3], sizes = [32, 9], strides = [1, 1]} : vector<32x12xf32> to vector<32x9xf32>
    %220 = vector.broadcast %218 : vector<32x1xf32> to vector<32x9xf32>
    %221 = arith.mulf %220, %219 : vector<32x9xf32>
    %222 = arith.addf %217, %221 : vector<32x9xf32>
    %223 = vector.extract_strided_slice %222 {offsets = [0, 0], sizes = [16, 9], strides = [1, 1]} : vector<32x9xf32> to vector<16x9xf32>
    %224 = vector.extract_strided_slice %222 {offsets = [16, 0], sizes = [16, 9], strides = [1, 1]} : vector<32x9xf32> to vector<16x9xf32>
    %225 = tpu.concatenate %223, %224 in 0 : vector<16x9xf32>, vector<16x9xf32> -> vector<32x9xf32>
    %226 = vector.extract_strided_slice %7 {offsets = [0, 64], sizes = [32, 32], strides = [1, 1]} : vector<32x96xf32> to vector<32x32xf32>
    %cst_32 = arith.constant dense<0.000000e+00> : vector<32x9xf32>
    %227 = tpu.matmul %226, %225, %cst_32 {dimension_numbers = #tpu.dot_dimension_numbers<[1], [0], [0], [1], [0, 0, 1, 1], [], []>} : vector<32x32xf32>, vector<32x9xf32>, vector<32x9xf32> -> vector<32x9xf32>
    %228 = vector.extract_strided_slice %8 {offsets = [0, 2], sizes = [32, 1], strides = [1, 1]} : vector<32x3xf32> to vector<32x1xf32>
    %229 = vector.broadcast %228 : vector<32x1xf32> to vector<32x9xf32>
    %230 = arith.addf %227, %229 : vector<32x9xf32>
    %cst_33 = arith.constant 0.000000e+00 : f32
    %231 = vector.broadcast %cst_33 : f32 to vector<32x9xf32>
    %232 = arith.maximumf %230, %231 : vector<32x9xf32>
    %233 = vector.extract_strided_slice %9 {offsets = [0, 54], sizes = [32, 9], strides = [1, 1]} : vector<32x81xf32> to vector<32x9xf32>
    %234 = arith.mulf %232, %233 : vector<32x9xf32>
    %cst_34 = arith.constant dense<0.000000e+00> : vector<32xf32>
    %235 = vector.multi_reduction <add>, %234, %cst_34 [1] : vector<32x9xf32> to vector<32xf32>
    %236 = vector.shape_cast %235 : vector<32xf32> to vector<32x1xf32>
    %cst_35 = arith.constant dense<0.000000e+00> : vector<1xf32>
    %237 = vector.multi_reduction <add>, %236, %cst_35 [0] : vector<32x1xf32> to vector<1xf32>
    %238 = vector.shape_cast %237 : vector<1xf32> to vector<1x1xf32>
    %239 = arith.addf %184, %238 : vector<1x1xf32>
    %240 = vector.shape_cast %239 : vector<1x1xf32> to vector<1x1xf32>
    %241 = vector.broadcast %240 : vector<1x1xf32> to vector<1x128xf32>
    %c0_36 = arith.constant 0 : index
    %c0_37 = arith.constant 0 : index
    %c0_38 = arith.constant 0 : index
    %242 = vector.load %arg10[%c0_36, %c0_37, %c0_38] : memref<1x1x128xf32, #tpu.memory_space<vmem>>, vector<1x1x128xf32>
    %243 = vector.shape_cast %242 : vector<1x1x128xf32> to vector<1x128xf32>
    %244 = vector.shape_cast %241 : vector<1x128xf32> to vector<1x1x128xf32>
    tpu.vector_store %arg10[%c0_36, %c0_37, %c0_38], %244 {strides = array<i32>} : memref<1x1x128xf32, #tpu.memory_space<vmem>>, vector<1x1x128xf32>,
    return
  }
  func.func @transform_0(%arg0: i32) -> (i32, i32, i32) {
    %c0_i32 = arith.constant 0 : i32
    %c0_i32_0 = arith.constant 0 : i32
    %c0_i32_1 = arith.constant 0 : i32
    return %arg0, %c0_i32, %c0_i32_0 : i32, i32, i32
  }
  func.func @transform_1(%arg0: i32) -> (i32, i32) {
    %c0_i32 = arith.constant 0 : i32
    %c0_i32_0 = arith.constant 0 : i32
    %c0_i32_1 = arith.constant 0 : i32
    return %c0_i32, %c0_i32_0 : i32, i32
  }
  func.func @transform_2(%arg0: i32) -> (i32, i32) {
    %c0_i32 = arith.constant 0 : i32
    %c0_i32_0 = arith.constant 0 : i32
    %c0_i32_1 = arith.constant 0 : i32
    return %c0_i32, %c0_i32_0 : i32, i32
  }
  func.func @transform_3(%arg0: i32) -> (i32, i32) {
    %c0_i32 = arith.constant 0 : i32
    %c0_i32_0 = arith.constant 0 : i32
    %c0_i32_1 = arith.constant 0 : i32
    return %c0_i32, %c0_i32_0 : i32, i32
  }
  func.func @transform_4(%arg0: i32) -> (i32, i32) {
    %c0_i32 = arith.constant 0 : i32
    %c0_i32_0 = arith.constant 0 : i32
    %c0_i32_1 = arith.constant 0 : i32
    return %c0_i32, %c0_i32_0 : i32, i32
  }
  func.func @transform_5(%arg0: i32) -> (i32, i32) {
    %c0_i32 = arith.constant 0 : i32
    %c0_i32_0 = arith.constant 0 : i32
    %c0_i32_1 = arith.constant 0 : i32
    return %c0_i32, %c0_i32_0 : i32, i32
  }
  func.func @transform_6(%arg0: i32) -> (i32, i32) {
    %c0_i32 = arith.constant 0 : i32
    %c0_i32_0 = arith.constant 0 : i32
    %c0_i32_1 = arith.constant 0 : i32
    return %c0_i32, %c0_i32_0 : i32, i32
  }
  func.func @transform_7(%arg0: i32) -> (i32, i32) {
    %c0_i32 = arith.constant 0 : i32
    %c0_i32_0 = arith.constant 0 : i32
    %c0_i32_1 = arith.constant 0 : i32
    return %c0_i32, %c0_i32_0 : i32, i32
  }
  func.func @transform_8(%arg0: i32) -> (i32, i32) {
    %c0_i32 = arith.constant 0 : i32
    %c0_i32_0 = arith.constant 0 : i32
    %c0_i32_1 = arith.constant 0 : i32
    return %c0_i32, %c0_i32_0 : i32, i32
  }
  func.func @transform_9(%arg0: i32) -> (i32, i32, i32) {
    %c0_i32 = arith.constant 0 : i32
    %c0_i32_0 = arith.constant 0 : i32
    %c0_i32_1 = arith.constant 0 : i32
    return %arg0, %c0_i32, %c0_i32_0 : i32, i32, i32
  }
}

</mosaic_0001>

<llo_original>
// kernel: tile.157
$region0: #{tile.157}
  %s0 = inlined_call_operand.vmem [shape: f32[2,16,4], index: 0, kind: input, shape index: {}]
  %s1 = inlined_call_operand.vmem [shape: f32[32,4], index: 1, kind: output, shape index: {}]
  $region1: #{tile.157} parent=0
    #allocation0 [shape = 'u8[4096]{0}', space=vmem, size = 0x1000, scoped, tag = 'scoped mem for output reshape']
    #allocation1 [shape = 'u8[16384]{0}', space=vmem, size = 0x4000, scoped, tag = 'scoped mem for input reshape']
    %s3 = ssub.s32 4, 1
    %s4 = scalar_lea.vmem %s0, 6
    %v5 = vld [vmem:[%s4] sm:%s3]
    %s6 = scalar_lea.vmem [#allocation1], 24
    %7 = vst [vmem:[%s6] sm:%s3] %v5
    %s8 = scalar_lea.vmem %s0, 4
    %v9 = vld [vmem:[%s8] sm:%s3]
    %s10 = scalar_lea.vmem [#allocation1], 16
    %11 = vst [vmem:[%s10] sm:%s3] %v9
    %s12 = scalar_lea.vmem %s0, 2
    %v13 = vld [vmem:[%s12] sm:%s3]
    %s14 = scalar_lea.vmem [#allocation1], 8
    %15 = vst [vmem:[%s14] sm:%s3] %v13
    %v16 = vld [vmem:[%s0] sm:%s3]
    %17 = vst [vmem:[#allocation1] sm:%s3] %v16
    %v18 = vld [vmem:[#allocation1] ss:$8 sm:$0xf]
    %vm19 = vcmask 130048
    %20 = vst.msk [vmem:[#allocation0] sm:$0xf] %vm19, %v18
    %s21 = scalar_lea.vmem [#allocation1], 1
    %v22 = vld [vmem:[%s21] ss:$8 sm:$0xf]
    %23 = vrot.lane.b32.xlu0 %v22, 16
    %v24 = vpop.permute.xlu0 %23
    %vm25 = vcmask 261248
    %26 = vst.msk [vmem:[#allocation0] sm:$0xf] %vm25, %v24
    %s28 = ssub.s32 16, 1
    %v29 = vld [vmem:[#allocation0] sm:%s28]
    %s31 = ssub.s32 16, 1
    %32 = vst [vmem:[%s1] sm:%s31] %v29

// kernel: tile.121
$region0: #{tile.121}
  %s0 = inlined_call_operand.vmem [shape: f32[3,16,4], index: 0, kind: input, shape index: {}]
  %s1 = inlined_call_operand.vmem [shape: f32[48,4], index: 1, kind: output, shape index: {}]
  $region1: #{tile.121} parent=0
    #allocation0 [shape = 'u8[4096]{0}', space=vmem, size = 0x1000, scoped, tag = 'scoped mem for output reshape']
    #allocation1 [shape = 'u8[16384]{0}', space=vmem, size = 0x4000, scoped, tag = 'scoped mem for input reshape']
    %s3 = ssub.s32 16, 1
    %s4 = scalar_lea.vmem %s0, 12
    %v5 = vld [vmem:[%s4] sm:%s3]
    %s6 = scalar_lea.vmem [#allocation1], 24
    %7 = vst [vmem:[%s6] sm:%s3] %v5
    %s8 = scalar_lea.vmem %s0, 8
    %v9 = vld [vmem:[%s8] sm:%s3]
    %s10 = scalar_lea.vmem [#allocation1], 16
    %11 = vst [vmem:[%s10] sm:%s3] %v9
    %s12 = scalar_lea.vmem %s0, 4
    %v13 = vld [vmem:[%s12] sm:%s3]
    %s14 = scalar_lea.vmem [#allocation1], 8
    %15 = vst [vmem:[%s14] sm:%s3] %v13
    %v16 = vld [vmem:[%s0] sm:%s3]
    %17 = vst [vmem:[#allocation1] sm:%s3] %v16
    %v18 = vld [vmem:[#allocation1] ss:$8 sm:$0xf]
    %vm19 = vcmask 130048
    %20 = vst.msk [vmem:[#allocation0] sm:$0xf] %vm19, %v18
    %s21 = scalar_lea.vmem [#allocation1], 2
    %v22 = vld [vmem:[%s21] ss:$8 sm:$0xf]
    %23 = vrot.lane.b32.xlu0 %v22, 32
    %v24 = vpop.permute.xlu0 %23
    %vm25 = vcmask 392448
    %26 = vst.msk [vmem:[#allocation0] sm:$0xf] %vm25, %v24
    %s27 = scalar_lea.vmem [#allocation1], 1
    %v28 = vld [vmem:[%s27] ss:$8 sm:$0xf]
    %29 = vrot.lane.b32.xlu0 %v28, 16
    %v30 = vpop.permute.xlu0 %29
    %vm31 = vcmask 261248
    %32 = vst.msk [vmem:[#allocation0] sm:$0xf] %vm31, %v30
    %s34 = ssub.s32 16, 1
    %v35 = vld [vmem:[#allocation0] sm:%s34]
    %s37 = ssub.s32 16, 1
    %38 = vst [vmem:[%s1] sm:%s37] %v35

// kernel: _lambda_.1
$region0: #{_lambda_.1}
  #allocation0 [shape = 'u32[]', space=smem, size = 0x4, offset = 0x4, fixed_abs, tag = 'smem constant byte address 0x4 - core index']
  #allocation1 [shape = 'u32[72,128]{1,0:T(1,128)}', space=vmem, size = 0x9000, scoped, tag = 'internal scratch']
  %s0 = inlined_call_operand.vmem [shape: f32[2,4,72], index: 0, kind: input, shape index: {}]
  %s1 = inlined_call_operand.vmem [shape: f32[64,8], index: 1, kind: input, shape index: {}]
  %s2 = inlined_call_operand.vmem [shape: f32[64,1], index: 2, kind: input, shape index: {}]
  %s3 = inlined_call_operand.vmem [shape: f32[64,12], index: 3, kind: input, shape index: {}]
  %s4 = inlined_call_operand.vmem [shape: f32[96,9], index: 4, kind: input, shape index: {}]
  %s5 = inlined_call_operand.vmem [shape: f32[96,12], index: 5, kind: input, shape index: {}]
  %s6 = inlined_call_operand.vmem [shape: f32[32,96], index: 6, kind: input, shape index: {}]
  %s7 = inlined_call_operand.vmem [shape: f32[32,3], index: 7, kind: input, shape index: {}]
  %s8 = inlined_call_operand.vmem [shape: f32[32,81], index: 8, kind: input, shape index: {}]
  %s9 = inlined_call_operand.vmem [shape: f32[2,1,128], index: 9, kind: output, shape index: {}]
  %s10 = sld [smem:[#allocation0]]
  $region69: #{_lambda_.1} parent=0
    _
  %s12 = ssub.s32 1, %s10
  %s13 = scalar_select 0, %s12, %s10
  loop: start=0, step=1, limit=4
  $region2: #{_lambda_.1} parent=0 // loop_pre_header
    _
  $region3: #{_lambda_.1} parent=0 // loop_header
    %s15 = sphi 0, %s19
    %p16 = scmp.ge.s32.totalorder %s15, 4
    %s25 = sphi 0, %s27
    %s28 = sphi 0, %s25
    %s29 = sphi 0, %s28
    %s45 = sphi 0, %s29
    %s49 = sphi 0, %s49
    %s51 = sphi 0, %s49
    %s52 = sphi 0, %s51
    %s66 = sphi 0, %s52
    %s70 = sphi 0, %s70
    %s72 = sphi 0, %s70
    %s73 = sphi 0, %s72
    %s87 = sphi 0, %s73
    %s91 = sphi 0, %s91
    %s93 = sphi 0, %s91
    %s94 = sphi 0, %s93
    %s108 = sphi 0, %s94
    %s112 = sphi 0, %s112
    %s114 = sphi 0, %s112
    %s115 = sphi 0, %s114
    %s129 = sphi 0, %s115
    %s133 = sphi 0, %s133
    %s135 = sphi 0, %s133
    %s136 = sphi 0, %s135
    %s150 = sphi 0, %s136
    %s154 = sphi 0, %s154
    %s156 = sphi 0, %s154
    %s157 = sphi 0, %s156
    %s171 = sphi 0, %s157
    %s175 = sphi 0, %s175
    %s177 = sphi 0, %s175
    %s178 = sphi 0, %s177
    %s192 = sphi 0, %s178
    %s196 = sphi 0, %s196
    %s198 = sphi 0, %s196
    %s199 = sphi 0, %s198
    %s213 = sphi 0, %s199
    %s219 = sphi 0, %s221
    %s222 = sphi 0, %s219
    %s223 = sphi 0, %s222
    %s239 = sphi 0, %s223
  $region4: #{_lambda_.1} parent=0 // loop_header_branch
    %18 = sbr.rel (%p16) target = $region8
  $region5: #{_lambda_.1} parent=0 // loop_body
    %s20 = ssub.s32 %s15, 1
    %s21 = ssub.s32 %s15, 2
    %s22 = sadd.s32 %s15, 1
    %s23 = ssub.s32 %s15, %s22
    %p24 = scmp.eq.s32.totalorder %s23, 0
    %s26 = sadd.s32 %s25, 1
    %s27 = scalar_select %p24, %s25, %s26
    %p30 = pneg %p24
    %p31 = scmp.eq.s32.totalorder %s15, 1
    %p32 = por %p30, %p31
    %p33 = scmp.ne.s32.totalorder %s25, %s28
    %p34 = scmp.eq.s32.totalorder %s15, 0
    %p35 = por %p33, %p34
    %p36 = scmp.ne.s32.totalorder %s25, %s28
    %p37 = scmp.eq.s32.totalorder %s20, 1
    %p38 = por %p36, %p37
    %p39 = scmp.ne.s32.totalorder %s28, %s29
    %p40 = scmp.eq.s32.totalorder %s20, 0
    %p41 = por %p39, %p40
    %p42 = scmp.ne.s32.totalorder %s28, %s29
    %p43 = scmp.eq.s32.totalorder %s21, 1
    %p44 = por %p42, %p43
    %p46 = scmp.ne.s32.totalorder %s29, %s45
    %p47 = scmp.eq.s32.totalorder %s21, 0
    %p48 = por %p46, %p47
    %s50 = sadd.s32 %s49, 1
    %p53 = scmp.eq.s32.totalorder %s15, 1
    %p54 = scmp.ne.s32.totalorder %s49, %s51
    %p55 = scmp.eq.s32.totalorder %s15, 0
    %p56 = por %p54, %p55
    %p57 = scmp.ne.s32.totalorder %s49, %s51
    %p58 = scmp.eq.s32.totalorder %s20, 1
    %p59 = por %p57, %p58
    %p60 = scmp.ne.s32.totalorder %s51, %s52
    %p61 = scmp.eq.s32.totalorder %s20, 0
    %p62 = por %p60, %p61
    %p63 = scmp.ne.s32.totalorder %s51, %s52
    %p64 = scmp.eq.s32.totalorder %s21, 1
    %p65 = por %p63, %p64
    %p67 = scmp.ne.s32.totalorder %s52, %s66
    %p68 = scmp.eq.s32.totalorder %s21, 0
    %p69 = por %p67, %p68
    %s71 = sadd.s32 %s70, 1
    %p74 = scmp.eq.s32.totalorder %s15, 1
    %p75 = scmp.ne.s32.totalorder %s70, %s72
    %p76 = scmp.eq.s32.totalorder %s15, 0
    %p77 = por %p75, %p76
    %p78 = scmp.ne.s32.totalorder %s70, %s72
    %p79 = scmp.eq.s32.totalorder %s20, 1
    %p80 = por %p78, %p79
    %p81 = scmp.ne.s32.totalorder %s72, %s73
    %p82 = scmp.eq.s32.totalorder %s20, 0
    %p83 = por %p81, %p82
    %p84 = scmp.ne.s32.totalorder %s72, %s73
    %p85 = scmp.eq.s32.totalorder %s21, 1
    %p86 = por %p84, %p85
    %p88 = scmp.ne.s32.totalorder %s73, %s87
    %p89 = scmp.eq.s32.totalorder %s21, 0
    %p90 = por %p88, %p89
    %s92 = sadd.s32 %s91, 1
    %p95 = scmp.eq.s32.totalorder %s15, 1
    %p96 = scmp.ne.s32.totalorder %s91, %s93
    %p97 = scmp.eq.s32.totalorder %s15, 0
    %p98 = por %p96, %p97
    %p99 = scmp.ne.s32.totalorder %s91, %s93
    %p100 = scmp.eq.s32.totalorder %s20, 1
    %p101 = por %p99, %p100
    %p102 = scmp.ne.s32.totalorder %s93, %s94
    %p103 = scmp.eq.s32.totalorder %s20, 0
    %p104 = por %p102, %p103
    %p105 = scmp.ne.s32.totalorder %s93, %s94
    %p106 = scmp.eq.s32.totalorder %s21, 1
    %p107 = por %p105, %p106
    %p109 = scmp.ne.s32.totalorder %s94, %s108
    %p110 = scmp.eq.s32.totalorder %s21, 0
    %p111 = por %p109, %p110
    %s113 = sadd.s32 %s112, 1
    %p116 = scmp.eq.s32.totalorder %s15, 1
    %p117 = scmp.ne.s32.totalorder %s112, %s114
    %p118 = scmp.eq.s32.totalorder %s15, 0
    %p119 = por %p117, %p118
    %p120 = scmp.ne.s32.totalorder %s112, %s114
    %p121 = scmp.eq.s32.totalorder %s20, 1
    %p122 = por %p120, %p121
    %p123 = scmp.ne.s32.totalorder %s114, %s115
    %p124 = scmp.eq.s32.totalorder %s20, 0
    %p125 = por %p123, %p124
    %p126 = scmp.ne.s32.totalorder %s114, %s115
    %p127 = scmp.eq.s32.totalorder %s21, 1
    %p128 = por %p126, %p127
    %p130 = scmp.ne.s32.totalorder %s115, %s129
    %p131 = scmp.eq.s32.totalorder %s21, 0
    %p132 = por %p130, %p131
    %s134 = sadd.s32 %s133, 1
    %p137 = scmp.eq.s32.totalorder %s15, 1
    %p138 = scmp.ne.s32.totalorder %s133, %s135
    %p139 = scmp.eq.s32.totalorder %s15, 0
    %p140 = por %p138, %p139
    %p141 = scmp.ne.s32.totalorder %s133, %s135
    %p142 = scmp.eq.s32.totalorder %s20, 1
    %p143 = por %p141, %p142
    %p144 = scmp.ne.s32.totalorder %s135, %s136
    %p145 = scmp.eq.s32.totalorder %s20, 0
    %p146 = por %p144, %p145
    %p147 = scmp.ne.s32.totalorder %s135, %s136
    %p148 = scmp.eq.s32.totalorder %s21, 1
    %p149 = por %p147, %p148
    %p151 = scmp.ne.s32.totalorder %s136, %s150
    %p152 = scmp.eq.s32.totalorder %s21, 0
    %p153 = por %p151, %p152
    %s155 = sadd.s32 %s154, 1
    %p158 = scmp.eq.s32.totalorder %s15, 1
    %p159 = scmp.ne.s32.totalorder %s154, %s156
    %p160 = scmp.eq.s32.totalorder %s15, 0
    %p161 = por %p159, %p160
    %p162 = scmp.ne.s32.totalorder %s154, %s156
    %p163 = scmp.eq.s32.totalorder %s20, 1
    %p164 = por %p162, %p163
    %p165 = scmp.ne.s32.totalorder %s156, %s157
    %p166 = scmp.eq.s32.totalorder %s20, 0
    %p167 = por %p165, %p166
    %p168 = scmp.ne.s32.totalorder %s156, %s157
    %p169 = scmp.eq.s32.totalorder %s21, 1
    %p170 = por %p168, %p169
    %p172 = scmp.ne.s32.totalorder %s157, %s171
    %p173 = scmp.eq.s32.totalorder %s21, 0
    %p174 = por %p172, %p173
    %s176 = sadd.s32 %s175, 1
    %p179 = scmp.eq.s32.totalorder %s15, 1
    %p180 = scmp.ne.s32.totalorder %s175, %s177
    %p181 = scmp.eq.s32.totalorder %s15, 0
    %p182 = por %p180, %p181
    %p183 = scmp.ne.s32.totalorder %s175, %s177
    %p184 = scmp.eq.s32.totalorder %s20, 1
    %p185 = por %p183, %p184
    %p186 = scmp.ne.s32.totalorder %s177, %s178
    %p187 = scmp.eq.s32.totalorder %s20, 0
    %p188 = por %p186, %p187
    %p189 = scmp.ne.s32.totalorder %s177, %s178
    %p190 = scmp.eq.s32.totalorder %s21, 1
    %p191 = por %p189, %p190
    %p193 = scmp.ne.s32.totalorder %s178, %s192
    %p194 = scmp.eq.s32.totalorder %s21, 0
    %p195 = por %p193, %p194
    %s197 = sadd.s32 %s196, 1
    %p200 = scmp.eq.s32.totalorder %s15, 1
    %p201 = scmp.ne.s32.totalorder %s196, %s198
    %p202 = scmp.eq.s32.totalorder %s15, 0
    %p203 = por %p201, %p202
    %p204 = scmp.ne.s32.totalorder %s196, %s198
    %p205 = scmp.eq.s32.totalorder %s20, 1
    %p206 = por %p204, %p205
    %p207 = scmp.ne.s32.totalorder %s198, %s199
    %p208 = scmp.eq.s32.totalorder %s20, 0
    %p209 = por %p207, %p208
    %p210 = scmp.ne.s32.totalorder %s198, %s199
    %p211 = scmp.eq.s32.totalorder %s21, 1
    %p212 = por %p210, %p211
    %p214 = scmp.ne.s32.totalorder %s199, %s213
    %p215 = scmp.eq.s32.totalorder %s21, 0
    %p216 = por %p214, %p215
    %s217 = ssub.s32 %s15, %s22
    %p218 = scmp.eq.s32.totalorder %s217, 0
    %s220 = sadd.s32 %s219, 1
    %s221 = scalar_select %p218, %s219, %s220
    %p224 = pneg %p218
    %p225 = scmp.eq.s32.totalorder %s15, 1
    %p226 = por %p224, %p225
    %p227 = scmp.ne.s32.totalorder %s219, %s222
    %p228 = scmp.eq.s32.totalorder %s15, 0
    %p229 = por %p227, %p228
    %p230 = scmp.ne.s32.totalorder %s219, %s222
    %p231 = scmp.eq.s32.totalorder %s20, 1
    %p232 = por %p230, %p231
    %p233 = scmp.ne.s32.totalorder %s222, %s223
    %p234 = scmp.eq.s32.totalorder %s20, 0
    %p235 = por %p233, %p234
    %p236 = scmp.ne.s32.totalorder %s222, %s223
    %p237 = scmp.eq.s32.totalorder %s21, 1
    %p238 = por %p236, %p237
    %p240 = scmp.ne.s32.totalorder %s223, %s239
    %p241 = scmp.eq.s32.totalorder %s21, 0
    %p242 = por %p240, %p241
    %p243 = scmp.le.s32.totalorder 1, %s15
    %p244 = scmp.lt.s32.totalorder %s15, 3
    %p245 = pnand %p243, %p244
    %p246 = pneg %p245
    // Predicated region
    $region9: #{_lambda_.1} parent=5 // pred_check
      _
    $region10: #{_lambda_.1} parent=5 // pred_check_branch
      %248 = sbr.rel (%p245) target = $region12
    $region11: #{_lambda_.1} parent=5 // pred_region
      %s249 = ssub.s32 %s15, 1
      // Predicated region
      $region13: #{_lambda_.1} parent=11 // pred_check
        %p250 = pneg %p62
      $region14: #{_lambda_.1} parent=11 // pred_check_branch
        %252 = sbr.rel (%p250) target = $region16
      $region15: #{_lambda_.1} parent=11 // pred_region
        _
      $region16: #{_lambda_.1} parent=11 // pred_fallthru
        _
      // Predicated region
      $region17: #{_lambda_.1} parent=11 // pred_check
        %p253 = pneg %p83
      $region18: #{_lambda_.1} parent=11 // pred_check_branch
        %255 = sbr.rel (%p253) target = $region20
      $region19: #{_lambda_.1} parent=11 // pred_region
        _
      $region20: #{_lambda_.1} parent=11 // pred_fallthru
        _
      // Predicated region
      $region21: #{_lambda_.1} parent=11 // pred_check
        %p256 = pneg %p104
      $region22: #{_lambda_.1} parent=11 // pred_check_branch
        %258 = sbr.rel (%p256) target = $region24
      $region23: #{_lambda_.1} parent=11 // pred_region
        _
      $region24: #{_lambda_.1} parent=11 // pred_fallthru
        _
      // Predicated region
      $region25: #{_lambda_.1} parent=11 // pred_check
        %p259 = pneg %p125
      $region26: #{_lambda_.1} parent=11 // pred_check_branch
        %261 = sbr.rel (%p259) target = $region28
      $region27: #{_lambda_.1} parent=11 // pred_region
        _
      $region28: #{_lambda_.1} parent=11 // pred_fallthru
        _
      // Predicated region
      $region29: #{_lambda_.1} parent=11 // pred_check
        %p262 = pneg %p146
      $region30: #{_lambda_.1} parent=11 // pred_check_branch
        %264 = sbr.rel (%p262) target = $region32
      $region31: #{_lambda_.1} parent=11 // pred_region
        _
      $region32: #{_lambda_.1} parent=11 // pred_fallthru
        _
      // Predicated region
      $region33: #{_lambda_.1} parent=11 // pred_check
        %p265 = pneg %p167
      $region34: #{_lambda_.1} parent=11 // pred_check_branch
        %267 = sbr.rel (%p265) target = $region36
      $region35: #{_lambda_.1} parent=11 // pred_region
        _
      $region36: #{_lambda_.1} parent=11 // pred_fallthru
        _
      // Predicated region
      $region37: #{_lambda_.1} parent=11 // pred_check
        %p268 = pneg %p188
      $region38: #{_lambda_.1} parent=11 // pred_check_branch
        %270 = sbr.rel (%p268) target = $region40
      $region39: #{_lambda_.1} parent=11 // pred_region
        _
      $region40: #{_lambda_.1} parent=11 // pred_fallthru
        _
      // Predicated region
      $region41: #{_lambda_.1} parent=11 // pred_check
        %p271 = pneg %p209
      $region42: #{_lambda_.1} parent=11 // pred_check_branch
        %273 = sbr.rel (%p271) target = $region44
      $region43: #{_lambda_.1} parent=11 // pred_region
        _
      $region44: #{_lambda_.1} parent=11 // pred_fallthru
        _
    $region12: #{_lambda_.1} parent=5 // pred_fallthru
      _
    %p274 = scmp.lt.s32.totalorder %s15, 2
    // Predicated region
    $region45: #{_lambda_.1} parent=5 // pred_check
      %p275 = pneg %p274
    $region46: #{_lambda_.1} parent=5 // pred_check_branch
      %277 = sbr.rel (%p275) target = $region48
    $region47: #{_lambda_.1} parent=5 // pred_region
      // Predicated region
      $region49: #{_lambda_.1} parent=47 // pred_check
        %p278 = pneg %p35
      $region50: #{_lambda_.1} parent=47 // pred_check_branch
        %280 = sbr.rel (%p278) target = $region52
      $region51: #{_lambda_.1} parent=47 // pred_region
        %p281 = scmp.lt.s32.totalorder %s15, 1
        %s282 = scalar_select %p281, %s15, 1
        %s283 = smul.addr %s282, 4
        %s284 = scalar_lea.vmem %s0, %s283
      $region52: #{_lambda_.1} parent=47 // pred_fallthru
        _
    $region48: #{_lambda_.1} parent=5 // pred_fallthru
      _
    %p285 = scmp.le.s32.totalorder 1, %s15
    %p286 = scmp.lt.s32.totalorder %s15, 3
    %p287 = pnand %p285, %p286
    %p288 = pneg %p287
    // Predicated region
    $region53: #{_lambda_.1} parent=5 // pred_check
      _
    $region54: #{_lambda_.1} parent=5 // pred_check_branch
      %290 = sbr.rel (%p287) target = $region56
    $region55: #{_lambda_.1} parent=5 // pred_region
      %s291 = ssub.s32 %s15, 1
      %p292 = scmp.lt.s32.totalorder %s20, 1
      %s293 = scalar_select %p292, %s20, 1
      %s294 = smul.addr %s293, 4
      %s295 = scalar_lea.vmem %s0, %s294
      %p296 = pneg %p41
      %p297 = pneg %p38
      %p298 = pneg %p62
      %p299 = pneg %p59
      %p300 = pneg %p83
      %p301 = pneg %p80
      %p302 = pneg %p104
      %p303 = pneg %p101
      %p304 = pneg %p125
      %p305 = pneg %p122
      %p306 = pneg %p146
      %p307 = pneg %p143
      %p308 = pneg %p167
      %p309 = pneg %p164
      %p310 = pneg %p188
      %p311 = pneg %p185
      %p312 = pneg %p209
      %p313 = pneg %p206
      %p314 = pneg %p235
      %p315 = pneg %p232
      %p316 = scmp.lt.s32.totalorder %s20, 1
      %s317 = scalar_select %p316, %s20, 1
      %s318 = scalar_lea.vmem %s9, %s317
      %p319 = scmp.lt.s32.totalorder %s20, 1
      %s320 = scalar_select %p319, %s20, 1
      %s321 = smul.addr %s320, 4
      %s322 = scalar_lea.vmem %s0, %s321
      %p323 = scmp.lt.s32.totalorder %s20, 1
      %s324 = scalar_select %p323, %s20, 1
      %s325 = scalar_lea.vmem %s9, %s324
      %v326 = vld [vmem:[%s322] sm:$0xf]
      %v327 = vld [vmem:[%s1] sm:$0xff]
      %v328 = vld [vmem:[%s1 + $0x8] sm:$0xff]
      %v329 = vld [vmem:[%s1 + $0x10] sm:$0xff]
      %v330 = vld [vmem:[%s1 + $0x18] sm:$0xff]
      %v331 = vld [vmem:[%s1 + $0x20] sm:$0xff]
      %v332 = vld [vmem:[%s1 + $0x28] sm:$0xff]
      %v333 = vld [vmem:[%s1 + $0x30] sm:$0xff]
      %v334 = vld [vmem:[%s1 + $0x38] sm:$0xff]
      %v335 = vld [vmem:[%s2] sm:$0xff]
      %v336 = vld [vmem:[%s2 + $0x8] sm:$0xff]
      %v337 = vld [vmem:[%s2 + $0x10] sm:$0xff]
      %v338 = vld [vmem:[%s2 + $0x18] sm:$0xff]
      %v339 = vld [vmem:[%s2 + $0x20] sm:$0xff]
      %v340 = vld [vmem:[%s2 + $0x28] sm:$0xff]
      %v341 = vld [vmem:[%s2 + $0x30] sm:$0xff]
      %v342 = vld [vmem:[%s2 + $0x38] sm:$0xff]
      %v343 = vld [vmem:[%s3] sm:$0xff]
      %v344 = vld [vmem:[%s3 + $0x8] sm:$0xff]
      %v345 = vld [vmem:[%s3 + $0x10] sm:$0xff]
      %v346 = vld [vmem:[%s3 + $0x18] sm:$0xff]
      %v347 = vld [vmem:[%s3 + $0x20] sm:$0xff]
      %v348 = vld [vmem:[%s3 + $0x28] sm:$0xff]
      %v349 = vld [vmem:[%s3 + $0x30] sm:$0xff]
      %v350 = vld [vmem:[%s3 + $0x38] sm:$0xff]
      %v351 = vld [vmem:[%s4] sm:$0xff]
      %v352 = vld [vmem:[%s4 + $0x8] sm:$0xff]
      %v353 = vld [vmem:[%s4 + $0x10] sm:$0xff]
      %v354 = vld [vmem:[%s4 + $0x18] sm:$0xff]
      %v355 = vld [vmem:[%s4 + $0x20] sm:$0xff]
      %v356 = vld [vmem:[%s4 + $0x28] sm:$0xff]
      %v357 = vld [vmem:[%s4 + $0x30] sm:$0xff]
      %v358 = vld [vmem:[%s4 + $0x38] sm:$0xff]
      %v359 = vld [vmem:[%s4 + $0x40] sm:$0xff]
      %v360 = vld [vmem:[%s4 + $0x48] sm:$0xff]
      %v361 = vld [vmem:[%s4 + $0x50] sm:$0xff]
      %v362 = vld [vmem:[%s4 + $0x58] sm:$0xff]
      %v363 = vld [vmem:[%s5] sm:$0xff]
      %v364 = vld [vmem:[%s5 + $0x8] sm:$0xff]
      %v365 = vld [vmem:[%s5 + $0x10] sm:$0xff]
      %v366 = vld [vmem:[%s5 + $0x18] sm:$0xff]
      %v367 = vld [vmem:[%s5 + $0x20] sm:$0xff]
      %v368 = vld [vmem:[%s5 + $0x28] sm:$0xff]
      %v369 = vld [vmem:[%s5 + $0x30] sm:$0xff]
      %v370 = vld [vmem:[%s5 + $0x38] sm:$0xff]
      %v371 = vld [vmem:[%s5 + $0x40] sm:$0xff]
      %v372 = vld [vmem:[%s5 + $0x48] sm:$0xff]
      %v373 = vld [vmem:[%s5 + $0x50] sm:$0xff]
      %v374 = vld [vmem:[%s5 + $0x58] sm:$0xff]
      %v375 = vld [vmem:[%s6] sm:$0xff]
      %v376 = vld [vmem:[%s6 + $0x8] sm:$0xff]
      %v377 = vld [vmem:[%s6 + $0x10] sm:$0xff]
      %v378 = vld [vmem:[%s6 + $0x18] sm:$0xff]
      %v379 = vld [vmem:[%s7] sm:$0xff]
      %v380 = vld [vmem:[%s7 + $0x8] sm:$0xff]
      %v381 = vld [vmem:[%s7 + $0x10] sm:$0xff]
      %v382 = vld [vmem:[%s7 + $0x18] sm:$0xff]
      %v383 = vld [vmem:[%s8] sm:$0xff]
      %v384 = vld [vmem:[%s8 + $0x8] sm:$0xff]
      %v385 = vld [vmem:[%s8 + $0x10] sm:$0xff]
      %v386 = vld [vmem:[%s8 + $0x18] sm:$0xff]
      %v387 = vperm.slane %v326, 0
      %v388 = vperm.slane %v326, 1
      %v389 = vperm.slane %v326, 2
      %v390 = vperm.slane %v326, 3
      %392 = vset.pattern.permute.xlu0 0
      %393 = vperm.xlu0 %392, %v327
      %v394 = vpop.permute.xlu0 %393
      %397 = vset.pattern.permute.xlu0 0
      %398 = vperm.xlu0 %397, %v328
      %v399 = vpop.permute.xlu0 %398
      %402 = vset.pattern.permute.xlu0 0
      %403 = vperm.xlu0 %402, %v329
      %v404 = vpop.permute.xlu0 %403
      %407 = vset.pattern.permute.xlu0 0
      %408 = vperm.xlu0 %407, %v330
      %v409 = vpop.permute.xlu0 %408
      %412 = vset.pattern.permute.xlu0 0
      %413 = vperm.xlu0 %412, %v331
      %v414 = vpop.permute.xlu0 %413
      %417 = vset.pattern.permute.xlu0 0
      %418 = vperm.xlu0 %417, %v332
      %v419 = vpop.permute.xlu0 %418
      %422 = vset.pattern.permute.xlu0 0
      %423 = vperm.xlu0 %422, %v333
      %v424 = vpop.permute.xlu0 %423
      %427 = vset.pattern.permute.xlu0 0
      %428 = vperm.xlu0 %427, %v334
      %v429 = vpop.permute.xlu0 %428
      %v431 = vmul.f32 %v394, %v387
      %v432 = vmul.f32 %v399, %v387
      %v433 = vmul.f32 %v404, %v388
      %v434 = vmul.f32 %v409, %v388
      %v435 = vmul.f32 %v414, %v389
      %v436 = vmul.f32 %v419, %v389
      %v437 = vmul.f32 %v424, %v390
      %v438 = vmul.f32 %v429, %v390
      %439 = vset.pattern.permute.xlu0 1
      %440 = vperm.xlu0 %439, %v327
      %v441 = vpop.permute.xlu0 %440
      %443 = vset.pattern.permute.xlu0 1
      %444 = vperm.xlu0 %443, %v328
      %v445 = vpop.permute.xlu0 %444
      %447 = vset.pattern.permute.xlu0 1
      %448 = vperm.xlu0 %447, %v329
      %v449 = vpop.permute.xlu0 %448
      %451 = vset.pattern.permute.xlu0 1
      %452 = vperm.xlu0 %451, %v330
      %v453 = vpop.permute.xlu0 %452
      %455 = vset.pattern.permute.xlu0 1
      %456 = vperm.xlu0 %455, %v331
      %v457 = vpop.permute.xlu0 %456
      %459 = vset.pattern.permute.xlu0 1
      %460 = vperm.xlu0 %459, %v332
      %v461 = vpop.permute.xlu0 %460
      %463 = vset.pattern.permute.xlu0 1
      %464 = vperm.xlu0 %463, %v333
      %v465 = vpop.permute.xlu0 %464
      %467 = vset.pattern.permute.xlu0 1
      %468 = vperm.xlu0 %467, %v334
      %v469 = vpop.permute.xlu0 %468
      %v471 = vmul.f32 %v441, %v387
      %v472 = vmul.f32 %v445, %v387
      %v473 = vmul.f32 %v449, %v388
      %v474 = vmul.f32 %v453, %v388
      %v475 = vmul.f32 %v457, %v389
      %v476 = vmul.f32 %v461, %v389
      %v477 = vmul.f32 %v465, %v390
      %v478 = vmul.f32 %v469, %v390
      %487 = vrot.lane.b32.xlu0 %v471, 127
      %v488 = vpop.permute.xlu0 %487
      %489 = vrot.lane.b32.xlu0 %v472, 127
      %v490 = vpop.permute.xlu0 %489
      %491 = vrot.lane.b32.xlu0 %v473, 127
      %v492 = vpop.permute.xlu0 %491
      %493 = vrot.lane.b32.xlu0 %v474, 127
      %v494 = vpop.permute.xlu0 %493
      %495 = vrot.lane.b32.xlu0 %v475, 127
      %v496 = vpop.permute.xlu0 %495
      %497 = vrot.lane.b32.xlu0 %v476, 127
      %v498 = vpop.permute.xlu0 %497
      %499 = vrot.lane.b32.xlu0 %v477, 127
      %v500 = vpop.permute.xlu0 %499
      %501 = vrot.lane.b32.xlu0 %v478, 127
      %v502 = vpop.permute.xlu0 %501
      %v511 = vadd.f32 %v431, %v488
      %v512 = vadd.f32 %v432, %v490
      %v513 = vadd.f32 %v433, %v492
      %v514 = vadd.f32 %v434, %v494
      %v515 = vadd.f32 %v435, %v496
      %v516 = vadd.f32 %v436, %v498
      %v517 = vadd.f32 %v437, %v500
      %v518 = vadd.f32 %v438, %v502
      %519 = vset.pattern.permute.xlu0 2
      %520 = vperm.xlu0 %519, %v327
      %v521 = vpop.permute.xlu0 %520
      %523 = vset.pattern.permute.xlu0 2
      %524 = vperm.xlu0 %523, %v328
      %v525 = vpop.permute.xlu0 %524
      %527 = vset.pattern.permute.xlu0 2
      %528 = vperm.xlu0 %527, %v329
      %v529 = vpop.permute.xlu0 %528
      %531 = vset.pattern.permute.xlu0 2
      %532 = vperm.xlu0 %531, %v330
      %v533 = vpop.permute.xlu0 %532
      %535 = vset.pattern.permute.xlu0 2
      %536 = vperm.xlu0 %535, %v331
      %v537 = vpop.permute.xlu0 %536
      %539 = vset.pattern.permute.xlu0 2
      %540 = vperm.xlu0 %539, %v332
      %v541 = vpop.permute.xlu0 %540
      %543 = vset.pattern.permute.xlu0 2
      %544 = vperm.xlu0 %543, %v333
      %v545 = vpop.permute.xlu0 %544
      %547 = vset.pattern.permute.xlu0 2
      %548 = vperm.xlu0 %547, %v334
      %v549 = vpop.permute.xlu0 %548
      %v551 = vmul.f32 %v521, %v387
      %v552 = vmul.f32 %v525, %v387
      %v553 = vmul.f32 %v529, %v388
      %v554 = vmul.f32 %v533, %v388
      %v555 = vmul.f32 %v537, %v389
      %v556 = vmul.f32 %v541, %v389
      %v557 = vmul.f32 %v545, %v390
      %v558 = vmul.f32 %v549, %v390
      %567 = vrot.lane.b32.xlu0 %v551, 126
      %v568 = vpop.permute.xlu0 %567
      %569 = vrot.lane.b32.xlu0 %v552, 126
      %v570 = vpop.permute.xlu0 %569
      %571 = vrot.lane.b32.xlu0 %v553, 126
      %v572 = vpop.permute.xlu0 %571
      %573 = vrot.lane.b32.xlu0 %v554, 126
      %v574 = vpop.permute.xlu0 %573
      %575 = vrot.lane.b32.xlu0 %v555, 126
      %v576 = vpop.permute.xlu0 %575
      %577 = vrot.lane.b32.xlu0 %v556, 126
      %v578 = vpop.permute.xlu0 %577
      %579 = vrot.lane.b32.xlu0 %v557, 126
      %v580 = vpop.permute.xlu0 %579
      %581 = vrot.lane.b32.xlu0 %v558, 126
      %v582 = vpop.permute.xlu0 %581
      %v591 = vadd.f32 %v511, %v568
      %v592 = vadd.f32 %v512, %v570
      %v593 = vadd.f32 %v513, %v572
      %v594 = vadd.f32 %v514, %v574
      %v595 = vadd.f32 %v515, %v576
      %v596 = vadd.f32 %v516, %v578
      %v597 = vadd.f32 %v517, %v580
      %v598 = vadd.f32 %v518, %v582
      %599 = vset.pattern.permute.xlu0 3
      %600 = vperm.xlu0 %599, %v327
      %v601 = vpop.permute.xlu0 %600
      %603 = vset.pattern.permute.xlu0 3
      %604 = vperm.xlu0 %603, %v328
      %v605 = vpop.permute.xlu0 %604
      %607 = vset.pattern.permute.xlu0 3
      %608 = vperm.xlu0 %607, %v329
      %v609 = vpop.permute.xlu0 %608
      %611 = vset.pattern.permute.xlu0 3
      %612 = vperm.xlu0 %611, %v330
      %v613 = vpop.permute.xlu0 %612
      %615 = vset.pattern.permute.xlu0 3
      %616 = vperm.xlu0 %615, %v331
      %v617 = vpop.permute.xlu0 %616
      %619 = vset.pattern.permute.xlu0 3
      %620 = vperm.xlu0 %619, %v332
      %v621 = vpop.permute.xlu0 %620
      %623 = vset.pattern.permute.xlu0 3
      %624 = vperm.xlu0 %623, %v333
      %v625 = vpop.permute.xlu0 %624
      %627 = vset.pattern.permute.xlu0 3
      %628 = vperm.xlu0 %627, %v334
      %v629 = vpop.permute.xlu0 %628
      %v631 = vmul.f32 %v601, %v387
      %v632 = vmul.f32 %v605, %v387
      %v633 = vmul.f32 %v609, %v388
      %v634 = vmul.f32 %v613, %v388
      %v635 = vmul.f32 %v617, %v389
      %v636 = vmul.f32 %v621, %v389
      %v637 = vmul.f32 %v625, %v390
      %v638 = vmul.f32 %v629, %v390
      %647 = vrot.lane.b32.xlu0 %v631, 125
      %v648 = vpop.permute.xlu0 %647
      %649 = vrot.lane.b32.xlu0 %v632, 125
      %v650 = vpop.permute.xlu0 %649
      %651 = vrot.lane.b32.xlu0 %v633, 125
      %v652 = vpop.permute.xlu0 %651
      %653 = vrot.lane.b32.xlu0 %v634, 125
      %v654 = vpop.permute.xlu0 %653
      %655 = vrot.lane.b32.xlu0 %v635, 125
      %v656 = vpop.permute.xlu0 %655
      %657 = vrot.lane.b32.xlu0 %v636, 125
      %v658 = vpop.permute.xlu0 %657
      %659 = vrot.lane.b32.xlu0 %v637, 125
      %v660 = vpop.permute.xlu0 %659
      %661 = vrot.lane.b32.xlu0 %v638, 125
      %v662 = vpop.permute.xlu0 %661
      %v671 = vadd.f32 %v591, %v648
      %v672 = vadd.f32 %v592, %v650
      %v673 = vadd.f32 %v593, %v652
      %v674 = vadd.f32 %v594, %v654
      %v675 = vadd.f32 %v595, %v656
      %v676 = vadd.f32 %v596, %v658
      %v677 = vadd.f32 %v597, %v660
      %v678 = vadd.f32 %v598, %v662
      %679 = vset.pattern.permute.xlu0 4
      %680 = vperm.xlu0 %679, %v327
      %v681 = vpop.permute.xlu0 %680
      %683 = vset.pattern.permute.xlu0 4
      %684 = vperm.xlu0 %683, %v328
      %v685 = vpop.permute.xlu0 %684
      %687 = vset.pattern.permute.xlu0 4
      %688 = vperm.xlu0 %687, %v329
      %v689 = vpop.permute.xlu0 %688
      %691 = vset.pattern.permute.xlu0 4
      %692 = vperm.xlu0 %691, %v330
      %v693 = vpop.permute.xlu0 %692
      %695 = vset.pattern.permute.xlu0 4
      %696 = vperm.xlu0 %695, %v331
      %v697 = vpop.permute.xlu0 %696
      %699 = vset.pattern.permute.xlu0 4
      %700 = vperm.xlu0 %699, %v332
      %v701 = vpop.permute.xlu0 %700
      %703 = vset.pattern.permute.xlu0 4
      %704 = vperm.xlu0 %703, %v333
      %v705 = vpop.permute.xlu0 %704
      %707 = vset.pattern.permute.xlu0 4
      %708 = vperm.xlu0 %707, %v334
      %v709 = vpop.permute.xlu0 %708
      %v711 = vmul.f32 %v681, %v387
      %v712 = vmul.f32 %v685, %v387
      %v713 = vmul.f32 %v689, %v388
      %v714 = vmul.f32 %v693, %v388
      %v715 = vmul.f32 %v697, %v389
      %v716 = vmul.f32 %v701, %v389
      %v717 = vmul.f32 %v705, %v390
      %v718 = vmul.f32 %v709, %v390
      %727 = vrot.lane.b32.xlu0 %v711, 124
      %v728 = vpop.permute.xlu0 %727
      %729 = vrot.lane.b32.xlu0 %v712, 124
      %v730 = vpop.permute.xlu0 %729
      %731 = vrot.lane.b32.xlu0 %v713, 124
      %v732 = vpop.permute.xlu0 %731
      %733 = vrot.lane.b32.xlu0 %v714, 124
      %v734 = vpop.permute.xlu0 %733
      %735 = vrot.lane.b32.xlu0 %v715, 124
      %v736 = vpop.permute.xlu0 %735
      %737 = vrot.lane.b32.xlu0 %v716, 124
      %v738 = vpop.permute.xlu0 %737
      %739 = vrot.lane.b32.xlu0 %v717, 124
      %v740 = vpop.permute.xlu0 %739
      %741 = vrot.lane.b32.xlu0 %v718, 124
      %v742 = vpop.permute.xlu0 %741
      %v751 = vadd.f32 %v671, %v728
      %v752 = vadd.f32 %v672, %v730
      %v753 = vadd.f32 %v673, %v732
      %v754 = vadd.f32 %v674, %v734
      %v755 = vadd.f32 %v675, %v736
      %v756 = vadd.f32 %v676, %v738
      %v757 = vadd.f32 %v677, %v740
      %v758 = vadd.f32 %v678, %v742
      %759 = vset.pattern.permute.xlu0 5
      %760 = vperm.xlu0 %759, %v327
      %v761 = vpop.permute.xlu0 %760
      %763 = vset.pattern.permute.xlu0 5
      %764 = vperm.xlu0 %763, %v328
      %v765 = vpop.permute.xlu0 %764
      %767 = vset.pattern.permute.xlu0 5
      %768 = vperm.xlu0 %767, %v329
      %v769 = vpop.permute.xlu0 %768
      %771 = vset.pattern.permute.xlu0 5
      %772 = vperm.xlu0 %771, %v330
      %v773 = vpop.permute.xlu0 %772
      %775 = vset.pattern.permute.xlu0 5
      %776 = vperm.xlu0 %775, %v331
      %v777 = vpop.permute.xlu0 %776
      %779 = vset.pattern.permute.xlu0 5
      %780 = vperm.xlu0 %779, %v332
      %v781 = vpop.permute.xlu0 %780
      %783 = vset.pattern.permute.xlu0 5
      %784 = vperm.xlu0 %783, %v333
      %v785 = vpop.permute.xlu0 %784
      %787 = vset.pattern.permute.xlu0 5
      %788 = vperm.xlu0 %787, %v334
      %v789 = vpop.permute.xlu0 %788
      %v791 = vmul.f32 %v761, %v387
      %v792 = vmul.f32 %v765, %v387
      %v793 = vmul.f32 %v769, %v388
      %v794 = vmul.f32 %v773, %v388
      %v795 = vmul.f32 %v777, %v389
      %v796 = vmul.f32 %v781, %v389
      %v797 = vmul.f32 %v785, %v390
      %v798 = vmul.f32 %v789, %v390
      %807 = vrot.lane.b32.xlu0 %v791, 123
      %v808 = vpop.permute.xlu0 %807
      %809 = vrot.lane.b32.xlu0 %v792, 123
      %v810 = vpop.permute.xlu0 %809
      %811 = vrot.lane.b32.xlu0 %v793, 123
      %v812 = vpop.permute.xlu0 %811
      %813 = vrot.lane.b32.xlu0 %v794, 123
      %v814 = vpop.permute.xlu0 %813
      %815 = vrot.lane.b32.xlu0 %v795, 123
      %v816 = vpop.permute.xlu0 %815
      %817 = vrot.lane.b32.xlu0 %v796, 123
      %v818 = vpop.permute.xlu0 %817
      %819 = vrot.lane.b32.xlu0 %v797, 123
      %v820 = vpop.permute.xlu0 %819
      %821 = vrot.lane.b32.xlu0 %v798, 123
      %v822 = vpop.permute.xlu0 %821
      %v831 = vadd.f32 %v751, %v808
      %v832 = vadd.f32 %v752, %v810
      %v833 = vadd.f32 %v753, %v812
      %v834 = vadd.f32 %v754, %v814
      %v835 = vadd.f32 %v755, %v816
      %v836 = vadd.f32 %v756, %v818
      %v837 = vadd.f32 %v757, %v820
      %v838 = vadd.f32 %v758, %v822
      %839 = vset.pattern.permute.xlu0 6
      %840 = vperm.xlu0 %839, %v327
      %v841 = vpop.permute.xlu0 %840
      %843 = vset.pattern.permute.xlu0 6
      %844 = vperm.xlu0 %843, %v328
      %v845 = vpop.permute.xlu0 %844
      %847 = vset.pattern.permute.xlu0 6
      %848 = vperm.xlu0 %847, %v329
      %v849 = vpop.permute.xlu0 %848
      %851 = vset.pattern.permute.xlu0 6
      %852 = vperm.xlu0 %851, %v330
      %v853 = vpop.permute.xlu0 %852
      %855 = vset.pattern.permute.xlu0 6
      %856 = vperm.xlu0 %855, %v331
      %v857 = vpop.permute.xlu0 %856
      %859 = vset.pattern.permute.xlu0 6
      %860 = vperm.xlu0 %859, %v332
      %v861 = vpop.permute.xlu0 %860
      %863 = vset.pattern.permute.xlu0 6
      %864 = vperm.xlu0 %863, %v333
      %v865 = vpop.permute.xlu0 %864
      %867 = vset.pattern.permute.xlu0 6
      %868 = vperm.xlu0 %867, %v334
      %v869 = vpop.permute.xlu0 %868
      %v871 = vmul.f32 %v841, %v387
      %v872 = vmul.f32 %v845, %v387
      %v873 = vmul.f32 %v849, %v388
      %v874 = vmul.f32 %v853, %v388
      %v875 = vmul.f32 %v857, %v389
      %v876 = vmul.f32 %v861, %v389
      %v877 = vmul.f32 %v865, %v390
      %v878 = vmul.f32 %v869, %v390
      %887 = vrot.lane.b32.xlu0 %v871, 122
      %v888 = vpop.permute.xlu0 %887
      %889 = vrot.lane.b32.xlu0 %v872, 122
      %v890 = vpop.permute.xlu0 %889
      %891 = vrot.lane.b32.xlu0 %v873, 122
      %v892 = vpop.permute.xlu0 %891
      %893 = vrot.lane.b32.xlu0 %v874, 122
      %v894 = vpop.permute.xlu0 %893
      %895 = vrot.lane.b32.xlu0 %v875, 122
      %v896 = vpop.permute.xlu0 %895
      %897 = vrot.lane.b32.xlu0 %v876, 122
      %v898 = vpop.permute.xlu0 %897
      %899 = vrot.lane.b32.xlu0 %v877, 122
      %v900 = vpop.permute.xlu0 %899
      %901 = vrot.lane.b32.xlu0 %v878, 122
      %v902 = vpop.permute.xlu0 %901
      %v911 = vadd.f32 %v831, %v888
      %v912 = vadd.f32 %v832, %v890
      %v913 = vadd.f32 %v833, %v892
      %v914 = vadd.f32 %v834, %v894
      %v915 = vadd.f32 %v835, %v896
      %v916 = vadd.f32 %v836, %v898
      %v917 = vadd.f32 %v837, %v900
      %v918 = vadd.f32 %v838, %v902
      %919 = vset.pattern.permute.xlu0 7
      %920 = vperm.xlu0 %919, %v327
      %v921 = vpop.permute.xlu0 %920
      %923 = vset.pattern.permute.xlu0 7
      %924 = vperm.xlu0 %923, %v328
      %v925 = vpop.permute.xlu0 %924
      %927 = vset.pattern.permute.xlu0 7
      %928 = vperm.xlu0 %927, %v329
      %v929 = vpop.permute.xlu0 %928
      %931 = vset.pattern.permute.xlu0 7
      %932 = vperm.xlu0 %931, %v330
      %v933 = vpop.permute.xlu0 %932
      %935 = vset.pattern.permute.xlu0 7
      %936 = vperm.xlu0 %935, %v331
      %v937 = vpop.permute.xlu0 %936
      %939 = vset.pattern.permute.xlu0 7
      %940 = vperm.xlu0 %939, %v332
      %v941 = vpop.permute.xlu0 %940
      %943 = vset.pattern.permute.xlu0 7
      %944 = vperm.xlu0 %943, %v333
      %v945 = vpop.permute.xlu0 %944
      %947 = vset.pattern.permute.xlu0 7
      %948 = vperm.xlu0 %947, %v334
      %v949 = vpop.permute.xlu0 %948
      %v951 = vmul.f32 %v921, %v387
      %v952 = vmul.f32 %v925, %v387
      %v953 = vmul.f32 %v929, %v388
      %v954 = vmul.f32 %v933, %v388
      %v955 = vmul.f32 %v937, %v389
      %v956 = vmul.f32 %v941, %v389
      %v957 = vmul.f32 %v945, %v390
      %v958 = vmul.f32 %v949, %v390
      %967 = vrot.lane.b32.xlu0 %v951, 121
      %v968 = vpop.permute.xlu0 %967
      %969 = vrot.lane.b32.xlu0 %v952, 121
      %v970 = vpop.permute.xlu0 %969
      %971 = vrot.lane.b32.xlu0 %v953, 121
      %v972 = vpop.permute.xlu0 %971
      %973 = vrot.lane.b32.xlu0 %v954, 121
      %v974 = vpop.permute.xlu0 %973
      %975 = vrot.lane.b32.xlu0 %v955, 121
      %v976 = vpop.permute.xlu0 %975
      %977 = vrot.lane.b32.xlu0 %v956, 121
      %v978 = vpop.permute.xlu0 %977
      %979 = vrot.lane.b32.xlu0 %v957, 121
      %v980 = vpop.permute.xlu0 %979
      %981 = vrot.lane.b32.xlu0 %v958, 121
      %v982 = vpop.permute.xlu0 %981
      %v991 = vadd.f32 %v911, %v968
      %v992 = vadd.f32 %v912, %v970
      %v993 = vadd.f32 %v913, %v972
      %v994 = vadd.f32 %v914, %v974
      %v995 = vadd.f32 %v915, %v976
      %v996 = vadd.f32 %v916, %v978
      %v997 = vadd.f32 %v917, %v980
      %v998 = vadd.f32 %v918, %v982
      %1000 = vset.pattern.permute.xlu0 0
      %1001 = vperm.xlu0 %1000, %v335
      %v1002 = vpop.permute.xlu0 %1001
      %1005 = vset.pattern.permute.xlu0 0
      %1006 = vperm.xlu0 %1005, %v336
      %v1007 = vpop.permute.xlu0 %1006
      %1010 = vset.pattern.permute.xlu0 0
      %1011 = vperm.xlu0 %1010, %v337
      %v1012 = vpop.permute.xlu0 %1011
      %1015 = vset.pattern.permute.xlu0 0
      %1016 = vperm.xlu0 %1015, %v338
      %v1017 = vpop.permute.xlu0 %1016
      %1020 = vset.pattern.permute.xlu0 0
      %1021 = vperm.xlu0 %1020, %v339
      %v1022 = vpop.permute.xlu0 %1021
      %1025 = vset.pattern.permute.xlu0 0
      %1026 = vperm.xlu0 %1025, %v340
      %v1027 = vpop.permute.xlu0 %1026
      %1030 = vset.pattern.permute.xlu0 0
      %1031 = vperm.xlu0 %1030, %v341
      %v1032 = vpop.permute.xlu0 %1031
      %1035 = vset.pattern.permute.xlu0 0
      %1036 = vperm.xlu0 %1035, %v342
      %v1037 = vpop.permute.xlu0 %1036
      %v1039 = vadd.f32 %v991, %v1002
      %v1040 = vadd.f32 %v992, %v1007
      %v1041 = vadd.f32 %v993, %v1012
      %v1042 = vadd.f32 %v994, %v1017
      %v1043 = vadd.f32 %v995, %v1022
      %v1044 = vadd.f32 %v996, %v1027
      %v1045 = vadd.f32 %v997, %v1032
      %v1046 = vadd.f32 %v998, %v1037
      %1048 = vset.pattern.permute.xlu0 0
      %1049 = vperm.xlu0 %1048, %v351
      %v1050 = vpop.permute.xlu0 %1049
      %1053 = vset.pattern.permute.xlu0 0
      %1054 = vperm.xlu0 %1053, %v352
      %v1055 = vpop.permute.xlu0 %1054
      %1058 = vset.pattern.permute.xlu0 0
      %1059 = vperm.xlu0 %1058, %v353
      %v1060 = vpop.permute.xlu0 %1059
      %1063 = vset.pattern.permute.xlu0 0
      %1064 = vperm.xlu0 %1063, %v354
      %v1065 = vpop.permute.xlu0 %1064
      %1068 = vset.pattern.permute.xlu0 0
      %1069 = vperm.xlu0 %1068, %v355
      %v1070 = vpop.permute.xlu0 %1069
      %1073 = vset.pattern.permute.xlu0 0
      %1074 = vperm.xlu0 %1073, %v356
      %v1075 = vpop.permute.xlu0 %1074
      %1078 = vset.pattern.permute.xlu0 0
      %1079 = vperm.xlu0 %1078, %v357
      %v1080 = vpop.permute.xlu0 %1079
      %1083 = vset.pattern.permute.xlu0 0
      %1084 = vperm.xlu0 %1083, %v358
      %v1085 = vpop.permute.xlu0 %1084
      %1088 = vset.pattern.permute.xlu0 0
      %1089 = vperm.xlu0 %1088, %v359
      %v1090 = vpop.permute.xlu0 %1089
      %1093 = vset.pattern.permute.xlu0 0
      %1094 = vperm.xlu0 %1093, %v360
      %v1095 = vpop.permute.xlu0 %1094
      %1098 = vset.pattern.permute.xlu0 0
      %1099 = vperm.xlu0 %1098, %v361
      %v1100 = vpop.permute.xlu0 %1099
      %1103 = vset.pattern.permute.xlu0 0
      %1104 = vperm.xlu0 %1103, %v362
      %v1105 = vpop.permute.xlu0 %1104
      %v1107 = vmul.f32 %v1050, %v1039
      %v1108 = vmul.f32 %v1055, %v1040
      %v1109 = vmul.f32 %v1060, %v1041
      %v1110 = vmul.f32 %v1065, %v1042
      %v1111 = vmul.f32 %v1070, %v1043
      %v1112 = vmul.f32 %v1075, %v1044
      %v1113 = vmul.f32 %v1080, %v1039
      %v1114 = vmul.f32 %v1085, %v1040
      %v1115 = vmul.f32 %v1090, %v1041
      %v1116 = vmul.f32 %v1095, %v1042
      %v1117 = vmul.f32 %v1100, %v1043
      %v1118 = vmul.f32 %v1105, %v1044
      %1119 = vset.pattern.permute.xlu0 1
      %1120 = vperm.xlu0 %1119, %v351
      %v1121 = vpop.permute.xlu0 %1120
      %1123 = vset.pattern.permute.xlu0 1
      %1124 = vperm.xlu0 %1123, %v352
      %v1125 = vpop.permute.xlu0 %1124
      %1127 = vset.pattern.permute.xlu0 1
      %1128 = vperm.xlu0 %1127, %v353
      %v1129 = vpop.permute.xlu0 %1128
      %1131 = vset.pattern.permute.xlu0 1
      %1132 = vperm.xlu0 %1131, %v354
      %v1133 = vpop.permute.xlu0 %1132
      %1135 = vset.pattern.permute.xlu0 1
      %1136 = vperm.xlu0 %1135, %v355
      %v1137 = vpop.permute.xlu0 %1136
      %1139 = vset.pattern.permute.xlu0 1
      %1140 = vperm.xlu0 %1139, %v356
      %v1141 = vpop.permute.xlu0 %1140
      %1143 = vset.pattern.permute.xlu0 1
      %1144 = vperm.xlu0 %1143, %v357
      %v1145 = vpop.permute.xlu0 %1144
      %1147 = vset.pattern.permute.xlu0 1
      %1148 = vperm.xlu0 %1147, %v358
      %v1149 = vpop.permute.xlu0 %1148
      %1151 = vset.pattern.permute.xlu0 1
      %1152 = vperm.xlu0 %1151, %v359
      %v1153 = vpop.permute.xlu0 %1152
      %1155 = vset.pattern.permute.xlu0 1
      %1156 = vperm.xlu0 %1155, %v360
      %v1157 = vpop.permute.xlu0 %1156
      %1159 = vset.pattern.permute.xlu0 1
      %1160 = vperm.xlu0 %1159, %v361
      %v1161 = vpop.permute.xlu0 %1160
      %1163 = vset.pattern.permute.xlu0 1
      %1164 = vperm.xlu0 %1163, %v362
      %v1165 = vpop.permute.xlu0 %1164
      %v1167 = vmul.f32 %v1121, %v1041
      %v1168 = vmul.f32 %v1125, %v1042
      %v1169 = vmul.f32 %v1129, %v1043
      %v1170 = vmul.f32 %v1133, %v1044
      %v1171 = vmul.f32 %v1137, %v1045
      %v1172 = vmul.f32 %v1141, %v1046
      %v1173 = vmul.f32 %v1145, %v1041
      %v1174 = vmul.f32 %v1149, %v1042
      %v1175 = vmul.f32 %v1153, %v1043
      %v1176 = vmul.f32 %v1157, %v1044
      %v1177 = vmul.f32 %v1161, %v1045
      %v1178 = vmul.f32 %v1165, %v1046
      %v1179 = vadd.f32 %v1107, %v1167
      %v1180 = vadd.f32 %v1108, %v1168
      %v1181 = vadd.f32 %v1109, %v1169
      %v1182 = vadd.f32 %v1110, %v1170
      %v1183 = vadd.f32 %v1111, %v1171
      %v1184 = vadd.f32 %v1112, %v1172
      %v1185 = vadd.f32 %v1113, %v1173
      %v1186 = vadd.f32 %v1114, %v1174
      %v1187 = vadd.f32 %v1115, %v1175
      %v1188 = vadd.f32 %v1116, %v1176
      %v1189 = vadd.f32 %v1117, %v1177
      %v1190 = vadd.f32 %v1118, %v1178
      %1191 = vset.pattern.permute.xlu0 2
      %1192 = vperm.xlu0 %1191, %v351
      %v1193 = vpop.permute.xlu0 %1192
      %1195 = vset.pattern.permute.xlu0 2
      %1196 = vperm.xlu0 %1195, %v352
      %v1197 = vpop.permute.xlu0 %1196
      %1199 = vset.pattern.permute.xlu0 2
      %1200 = vperm.xlu0 %1199, %v353
      %v1201 = vpop.permute.xlu0 %1200
      %1203 = vset.pattern.permute.xlu0 2
      %1204 = vperm.xlu0 %1203, %v354
      %v1205 = vpop.permute.xlu0 %1204
      %1207 = vset.pattern.permute.xlu0 2
      %1208 = vperm.xlu0 %1207, %v355
      %v1209 = vpop.permute.xlu0 %1208
      %1211 = vset.pattern.permute.xlu0 2
      %1212 = vperm.xlu0 %1211, %v356
      %v1213 = vpop.permute.xlu0 %1212
      %1215 = vset.pattern.permute.xlu0 2
      %1216 = vperm.xlu0 %1215, %v357
      %v1217 = vpop.permute.xlu0 %1216
      %1219 = vset.pattern.permute.xlu0 2
      %1220 = vperm.xlu0 %1219, %v358
      %v1221 = vpop.permute.xlu0 %1220
      %1223 = vset.pattern.permute.xlu0 2
      %1224 = vperm.xlu0 %1223, %v359
      %v1225 = vpop.permute.xlu0 %1224
      %1227 = vset.pattern.permute.xlu0 2
      %1228 = vperm.xlu0 %1227, %v360
      %v1229 = vpop.permute.xlu0 %1228
      %1231 = vset.pattern.permute.xlu0 2
      %1232 = vperm.xlu0 %1231, %v361
      %v1233 = vpop.permute.xlu0 %1232
      %1235 = vset.pattern.permute.xlu0 2
      %1236 = vperm.xlu0 %1235, %v362
      %v1237 = vpop.permute.xlu0 %1236
      %v1239 = vadd.f32 %v1179, %v1193
      %v1240 = vadd.f32 %v1180, %v1197
      %v1241 = vadd.f32 %v1181, %v1201
      %v1242 = vadd.f32 %v1182, %v1205
      %v1243 = vadd.f32 %v1183, %v1209
      %v1244 = vadd.f32 %v1184, %v1213
      %v1245 = vadd.f32 %v1185, %v1217
      %v1246 = vadd.f32 %v1186, %v1221
      %v1247 = vadd.f32 %v1187, %v1225
      %v1248 = vadd.f32 %v1188, %v1229
      %v1249 = vadd.f32 %v1189, %v1233
      %v1250 = vadd.f32 %v1190, %v1237
      %v1251 = vmax.f32 %v1239, 0.0
      %v1252 = vmax.f32 %v1240, 0.0
      %v1253 = vmax.f32 %v1241, 0.0
      %v1254 = vmax.f32 %v1242, 0.0
      %v1255 = vmax.f32 %v1243, 0.0
      %v1256 = vmax.f32 %v1244, 0.0
      %v1257 = vmax.f32 %v1245, 0.0
      %v1258 = vmax.f32 %v1246, 0.0
      %v1259 = vmax.f32 %v1247, 0.0
      %v1260 = vmax.f32 %v1248, 0.0
      %v1261 = vmax.f32 %v1249, 0.0
      %v1262 = vmax.f32 %v1250, 0.0
      %vm1263 = vcmask 523264
      %v1265 = vsel %vm1263, %v1251, 0
      %v1268 = vsel %vm1263, %v1252, 0
      %v1271 = vsel %vm1263, %v1253, 0
      %v1274 = vsel %vm1263, %v1254, 0
      %v1277 = vsel %vm1263, %v1255, 0
      %v1280 = vsel %vm1263, %v1256, 0
      %v1283 = vsel %vm1263, %v1257, 0
      %v1286 = vsel %vm1263, %v1258, 0
      %v1289 = vsel %vm1263, %v1259, 0
      %v1292 = vsel %vm1263, %v1260, 0
      %v1295 = vsel %vm1263, %v1261, 0
      %v1298 = vsel %vm1263, %v1262, 0
      %1300 = vmatpush.msra.mxu0 0.0
      %1301 = vmatpush.msra.mxu0 0.0
      %1302 = vmatpush.msra.mxu0 0.0
      %1303 = vmatpush.msra.mxu0 0.0
      %1304 = vmatpush.msra.mxu0 0.0
      %1305 = vmatpush.msra.mxu0 0.0
      %1306 = vmatpush.msra.mxu0 0.0
      %1307 = vmatpush.msra.mxu0 0.0
      %1308 = vmatpush.msra.mxu0 %v350
      %1309 = vmatpush.msra.mxu0 %v349
      %1310 = vmatpush.msra.mxu0 %v348
      %1311 = vmatpush.msra.mxu0 %v347
      %1312 = vmatpush.msra.mxu0 %v346
      %1313 = vmatpush.msra.mxu0 %v345
      %1314 = vmatpush.msra.mxu0 %v344
      %1315 = vmatpush.msra.mxu0 %v343
      %1316 = vmatmul.f32.gmra.mxu0 %v1265
      %v1317 = vpop.f32.mrf.mxu0
      %v1318 = vadd.f32 0.0, %v1317
      %1319 = vmatmul.f32.gmra.mxu0 %v1268
      %v1320 = vpop.f32.mrf.mxu0
      %v1321 = vadd.f32 0.0, %v1320
      %1322 = vmatmul.f32.gmra.mxu0 %v1271
      %v1323 = vpop.f32.mrf.mxu0
      %v1324 = vadd.f32 0.0, %v1323
      %1325 = vmatmul.f32.gmra.mxu0 %v1274
      %v1326 = vpop.f32.mrf.mxu0
      %v1327 = vadd.f32 0.0, %v1326
      %1328 = vmatmul.f32.gmra.mxu0 %v1277
      %v1329 = vpop.f32.mrf.mxu0
      %v1330 = vadd.f32 0.0, %v1329
      %1331 = vmatmul.f32.gmra.mxu0 %v1280
      %v1332 = vpop.f32.mrf.mxu0
      %v1333 = vadd.f32 0.0, %v1332
      %1334 = vmatmul.f32.gmra.mxu0 %v1283
      %v1335 = vpop.f32.mrf.mxu0
      %v1336 = vadd.f32 0.0, %v1335
      %1337 = vmatmul.f32.gmra.mxu0 %v1286
      %v1338 = vpop.f32.mrf.mxu0
      %v1339 = vadd.f32 0.0, %v1338
      %1340 = vmatmul.f32.gmra.mxu0 %v1289
      %v1341 = vpop.f32.mrf.mxu0
      %v1342 = vadd.f32 0.0, %v1341
      %1343 = vmatmul.f32.gmra.mxu0 %v1292
      %v1344 = vpop.f32.mrf.mxu0
      %v1345 = vadd.f32 0.0, %v1344
      %1346 = vmatmul.f32.gmra.mxu0 %v1295
      %v1347 = vpop.f32.mrf.mxu0
      %v1348 = vadd.f32 0.0, %v1347
      %1349 = vmatmul.f32.gmra.mxu0 %v1298
      %v1350 = vpop.f32.mrf.mxu0
      %v1351 = vadd.f32 0.0, %v1350
      %1352 = vdwg.mxu0
      %1354 = vset.pattern.permute.xlu0 0
      %1355 = vperm.xlu0 %1354, %v363
      %v1356 = vpop.permute.xlu0 %1355
      %1359 = vset.pattern.permute.xlu0 0
      %1360 = vperm.xlu0 %1359, %v364
      %v1361 = vpop.permute.xlu0 %1360
      %1364 = vset.pattern.permute.xlu0 0
      %1365 = vperm.xlu0 %1364, %v365
      %v1366 = vpop.permute.xlu0 %1365
      %1369 = vset.pattern.permute.xlu0 0
      %1370 = vperm.xlu0 %1369, %v366
      %v1371 = vpop.permute.xlu0 %1370
      %1374 = vset.pattern.permute.xlu0 0
      %1375 = vperm.xlu0 %1374, %v367
      %v1376 = vpop.permute.xlu0 %1375
      %1379 = vset.pattern.permute.xlu0 0
      %1380 = vperm.xlu0 %1379, %v368
      %v1381 = vpop.permute.xlu0 %1380
      %1384 = vset.pattern.permute.xlu0 0
      %1385 = vperm.xlu0 %1384, %v369
      %v1386 = vpop.permute.xlu0 %1385
      %1389 = vset.pattern.permute.xlu0 0
      %1390 = vperm.xlu0 %1389, %v370
      %v1391 = vpop.permute.xlu0 %1390
      %1394 = vset.pattern.permute.xlu0 0
      %1395 = vperm.xlu0 %1394, %v371
      %v1396 = vpop.permute.xlu0 %1395
      %1399 = vset.pattern.permute.xlu0 0
      %1400 = vperm.xlu0 %1399, %v372
      %v1401 = vpop.permute.xlu0 %1400
      %1404 = vset.pattern.permute.xlu0 0
      %1405 = vperm.xlu0 %1404, %v373
      %v1406 = vpop.permute.xlu0 %1405
      %1409 = vset.pattern.permute.xlu0 0
      %1410 = vperm.xlu0 %1409, %v374
      %v1411 = vpop.permute.xlu0 %1410
      %v1413 = vmul.f32 %v1356, %v1318
      %v1414 = vmul.f32 %v1361, %v1321
      %v1415 = vmul.f32 %v1366, %v1324
      %v1416 = vmul.f32 %v1371, %v1327
      %v1417 = vmul.f32 %v1376, %v1330
      %v1418 = vmul.f32 %v1381, %v1333
      %v1419 = vmul.f32 %v1386, %v1336
      %v1420 = vmul.f32 %v1391, %v1339
      %v1421 = vmul.f32 %v1396, %v1342
      %v1422 = vmul.f32 %v1401, %v1345
      %v1423 = vmul.f32 %v1406, %v1348
      %v1424 = vmul.f32 %v1411, %v1351
      %1425 = vset.pattern.permute.xlu0 1
      %1426 = vperm.xlu0 %1425, %v363
      %v1427 = vpop.permute.xlu0 %1426
      %1429 = vset.pattern.permute.xlu0 1
      %1430 = vperm.xlu0 %1429, %v364
      %v1431 = vpop.permute.xlu0 %1430
      %1433 = vset.pattern.permute.xlu0 1
      %1434 = vperm.xlu0 %1433, %v365
      %v1435 = vpop.permute.xlu0 %1434
      %1437 = vset.pattern.permute.xlu0 1
      %1438 = vperm.xlu0 %1437, %v366
      %v1439 = vpop.permute.xlu0 %1438
      %1441 = vset.pattern.permute.xlu0 1
      %1442 = vperm.xlu0 %1441, %v367
      %v1443 = vpop.permute.xlu0 %1442
      %1445 = vset.pattern.permute.xlu0 1
      %1446 = vperm.xlu0 %1445, %v368
      %v1447 = vpop.permute.xlu0 %1446
      %1449 = vset.pattern.permute.xlu0 1
      %1450 = vperm.xlu0 %1449, %v369
      %v1451 = vpop.permute.xlu0 %1450
      %1453 = vset.pattern.permute.xlu0 1
      %1454 = vperm.xlu0 %1453, %v370
      %v1455 = vpop.permute.xlu0 %1454
      %1457 = vset.pattern.permute.xlu0 1
      %1458 = vperm.xlu0 %1457, %v371
      %v1459 = vpop.permute.xlu0 %1458
      %1461 = vset.pattern.permute.xlu0 1
      %1462 = vperm.xlu0 %1461, %v372
      %v1463 = vpop.permute.xlu0 %1462
      %1465 = vset.pattern.permute.xlu0 1
      %1466 = vperm.xlu0 %1465, %v373
      %v1467 = vpop.permute.xlu0 %1466
      %1469 = vset.pattern.permute.xlu0 1
      %1470 = vperm.xlu0 %1469, %v374
      %v1471 = vpop.permute.xlu0 %1470
      %v1473 = vmul.f32 %v1427, %v1318
      %v1474 = vmul.f32 %v1431, %v1321
      %v1475 = vmul.f32 %v1435, %v1324
      %v1476 = vmul.f32 %v1439, %v1327
      %v1477 = vmul.f32 %v1443, %v1330
      %v1478 = vmul.f32 %v1447, %v1333
      %v1479 = vmul.f32 %v1451, %v1336
      %v1480 = vmul.f32 %v1455, %v1339
      %v1481 = vmul.f32 %v1459, %v1342
      %v1482 = vmul.f32 %v1463, %v1345
      %v1483 = vmul.f32 %v1467, %v1348
      %v1484 = vmul.f32 %v1471, %v1351
      %1497 = vrot.lane.b32.xlu0 %v1473, 127
      %v1498 = vpop.permute.xlu0 %1497
      %1499 = vrot.lane.b32.xlu0 %v1474, 127
      %v1500 = vpop.permute.xlu0 %1499
      %1501 = vrot.lane.b32.xlu0 %v1475, 127
      %v1502 = vpop.permute.xlu0 %1501
      %1503 = vrot.lane.b32.xlu0 %v1476, 127
      %v1504 = vpop.permute.xlu0 %1503
      %1505 = vrot.lane.b32.xlu0 %v1477, 127
      %v1506 = vpop.permute.xlu0 %1505
      %1507 = vrot.lane.b32.xlu0 %v1478, 127
      %v1508 = vpop.permute.xlu0 %1507
      %1509 = vrot.lane.b32.xlu0 %v1479, 127
      %v1510 = vpop.permute.xlu0 %1509
      %1511 = vrot.lane.b32.xlu0 %v1480, 127
      %v1512 = vpop.permute.xlu0 %1511
      %1513 = vrot.lane.b32.xlu0 %v1481, 127
      %v1514 = vpop.permute.xlu0 %1513
      %1515 = vrot.lane.b32.xlu0 %v1482, 127
      %v1516 = vpop.permute.xlu0 %1515
      %1517 = vrot.lane.b32.xlu0 %v1483, 127
      %v1518 = vpop.permute.xlu0 %1517
      %1519 = vrot.lane.b32.xlu0 %v1484, 127
      %v1520 = vpop.permute.xlu0 %1519
      %v1533 = vadd.f32 %v1413, %v1498
      %v1534 = vadd.f32 %v1414, %v1500
      %v1535 = vadd.f32 %v1415, %v1502
      %v1536 = vadd.f32 %v1416, %v1504
      %v1537 = vadd.f32 %v1417, %v1506
      %v1538 = vadd.f32 %v1418, %v1508
      %v1539 = vadd.f32 %v1419, %v1510
      %v1540 = vadd.f32 %v1420, %v1512
      %v1541 = vadd.f32 %v1421, %v1514
      %v1542 = vadd.f32 %v1422, %v1516
      %v1543 = vadd.f32 %v1423, %v1518
      %v1544 = vadd.f32 %v1424, %v1520
      %1545 = vset.pattern.permute.xlu0 2
      %1546 = vperm.xlu0 %1545, %v363
      %v1547 = vpop.permute.xlu0 %1546
      %1549 = vset.pattern.permute.xlu0 2
      %1550 = vperm.xlu0 %1549, %v364
      %v1551 = vpop.permute.xlu0 %1550
      %1553 = vset.pattern.permute.xlu0 2
      %1554 = vperm.xlu0 %1553, %v365
      %v1555 = vpop.permute.xlu0 %1554
      %1557 = vset.pattern.permute.xlu0 2
      %1558 = vperm.xlu0 %1557, %v366
      %v1559 = vpop.permute.xlu0 %1558
      %1561 = vset.pattern.permute.xlu0 2
      %1562 = vperm.xlu0 %1561, %v367
      %v1563 = vpop.permute.xlu0 %1562
      %1565 = vset.pattern.permute.xlu0 2
      %1566 = vperm.xlu0 %1565, %v368
      %v1567 = vpop.permute.xlu0 %1566
      %1569 = vset.pattern.permute.xlu0 2
      %1570 = vperm.xlu0 %1569, %v369
      %v1571 = vpop.permute.xlu0 %1570
      %1573 = vset.pattern.permute.xlu0 2
      %1574 = vperm.xlu0 %1573, %v370
      %v1575 = vpop.permute.xlu0 %1574
      %1577 = vset.pattern.permute.xlu0 2
      %1578 = vperm.xlu0 %1577, %v371
      %v1579 = vpop.permute.xlu0 %1578
      %1581 = vset.pattern.permute.xlu0 2
      %1582 = vperm.xlu0 %1581, %v372
      %v1583 = vpop.permute.xlu0 %1582
      %1585 = vset.pattern.permute.xlu0 2
      %1586 = vperm.xlu0 %1585, %v373
      %v1587 = vpop.permute.xlu0 %1586
      %1589 = vset.pattern.permute.xlu0 2
      %1590 = vperm.xlu0 %1589, %v374
      %v1591 = vpop.permute.xlu0 %1590
      %v1593 = vmul.f32 %v1547, %v1318
      %v1594 = vmul.f32 %v1551, %v1321
      %v1595 = vmul.f32 %v1555, %v1324
      %v1596 = vmul.f32 %v1559, %v1327
      %v1597 = vmul.f32 %v1563, %v1330
      %v1598 = vmul.f32 %v1567, %v1333
      %v1599 = vmul.f32 %v1571, %v1336
      %v1600 = vmul.f32 %v1575, %v1339
      %v1601 = vmul.f32 %v1579, %v1342
      %v1602 = vmul.f32 %v1583, %v1345
      %v1603 = vmul.f32 %v1587, %v1348
      %v1604 = vmul.f32 %v1591, %v1351
      %1617 = vrot.lane.b32.xlu0 %v1593, 126
      %v1618 = vpop.permute.xlu0 %1617
      %1619 = vrot.lane.b32.xlu0 %v1594, 126
      %v1620 = vpop.permute.xlu0 %1619
      %1621 = vrot.lane.b32.xlu0 %v1595, 126
      %v1622 = vpop.permute.xlu0 %1621
      %1623 = vrot.lane.b32.xlu0 %v1596, 126
      %v1624 = vpop.permute.xlu0 %1623
      %1625 = vrot.lane.b32.xlu0 %v1597, 126
      %v1626 = vpop.permute.xlu0 %1625
      %1627 = vrot.lane.b32.xlu0 %v1598, 126
      %v1628 = vpop.permute.xlu0 %1627
      %1629 = vrot.lane.b32.xlu0 %v1599, 126
      %v1630 = vpop.permute.xlu0 %1629
      %1631 = vrot.lane.b32.xlu0 %v1600, 126
      %v1632 = vpop.permute.xlu0 %1631
      %1633 = vrot.lane.b32.xlu0 %v1601, 126
      %v1634 = vpop.permute.xlu0 %1633
      %1635 = vrot.lane.b32.xlu0 %v1602, 126
      %v1636 = vpop.permute.xlu0 %1635
      %1637 = vrot.lane.b32.xlu0 %v1603, 126
      %v1638 = vpop.permute.xlu0 %1637
      %1639 = vrot.lane.b32.xlu0 %v1604, 126
      %v1640 = vpop.permute.xlu0 %1639
      %v1653 = vadd.f32 %v1533, %v1618
      %v1654 = vadd.f32 %v1534, %v1620
      %v1655 = vadd.f32 %v1535, %v1622
      %v1656 = vadd.f32 %v1536, %v1624
      %v1657 = vadd.f32 %v1537, %v1626
      %v1658 = vadd.f32 %v1538, %v1628
      %v1659 = vadd.f32 %v1539, %v1630
      %v1660 = vadd.f32 %v1540, %v1632
      %v1661 = vadd.f32 %v1541, %v1634
      %v1662 = vadd.f32 %v1542, %v1636
      %v1663 = vadd.f32 %v1543, %v1638
      %v1664 = vadd.f32 %v1544, %v1640
      %1665 = vset.pattern.permute.xlu0 3
      %1666 = vperm.xlu0 %1665, %v363
      %v1667 = vpop.permute.xlu0 %1666
      %1669 = vset.pattern.permute.xlu0 3
      %1670 = vperm.xlu0 %1669, %v364
      %v1671 = vpop.permute.xlu0 %1670
      %1673 = vset.pattern.permute.xlu0 3
      %1674 = vperm.xlu0 %1673, %v365
      %v1675 = vpop.permute.xlu0 %1674
      %1677 = vset.pattern.permute.xlu0 3
      %1678 = vperm.xlu0 %1677, %v366
      %v1679 = vpop.permute.xlu0 %1678
      %1681 = vset.pattern.permute.xlu0 3
      %1682 = vperm.xlu0 %1681, %v367
      %v1683 = vpop.permute.xlu0 %1682
      %1685 = vset.pattern.permute.xlu0 3
      %1686 = vperm.xlu0 %1685, %v368
      %v1687 = vpop.permute.xlu0 %1686
      %1689 = vset.pattern.permute.xlu0 3
      %1690 = vperm.xlu0 %1689, %v369
      %v1691 = vpop.permute.xlu0 %1690
      %1693 = vset.pattern.permute.xlu0 3
      %1694 = vperm.xlu0 %1693, %v370
      %v1695 = vpop.permute.xlu0 %1694
      %1697 = vset.pattern.permute.xlu0 3
      %1698 = vperm.xlu0 %1697, %v371
      %v1699 = vpop.permute.xlu0 %1698
      %1701 = vset.pattern.permute.xlu0 3
      %1702 = vperm.xlu0 %1701, %v372
      %v1703 = vpop.permute.xlu0 %1702
      %1705 = vset.pattern.permute.xlu0 3
      %1706 = vperm.xlu0 %1705, %v373
      %v1707 = vpop.permute.xlu0 %1706
      %1709 = vset.pattern.permute.xlu0 3
      %1710 = vperm.xlu0 %1709, %v374
      %v1711 = vpop.permute.xlu0 %1710
      %v1713 = vmul.f32 %v1667, %v1318
      %v1714 = vmul.f32 %v1671, %v1321
      %v1715 = vmul.f32 %v1675, %v1324
      %v1716 = vmul.f32 %v1679, %v1327
      %v1717 = vmul.f32 %v1683, %v1330
      %v1718 = vmul.f32 %v1687, %v1333
      %v1719 = vmul.f32 %v1691, %v1336
      %v1720 = vmul.f32 %v1695, %v1339
      %v1721 = vmul.f32 %v1699, %v1342
      %v1722 = vmul.f32 %v1703, %v1345
      %v1723 = vmul.f32 %v1707, %v1348
      %v1724 = vmul.f32 %v1711, %v1351
      %1737 = vrot.lane.b32.xlu0 %v1713, 125
      %v1738 = vpop.permute.xlu0 %1737
      %1739 = vrot.lane.b32.xlu0 %v1714, 125
      %v1740 = vpop.permute.xlu0 %1739
      %1741 = vrot.lane.b32.xlu0 %v1715, 125
      %v1742 = vpop.permute.xlu0 %1741
      %1743 = vrot.lane.b32.xlu0 %v1716, 125
      %v1744 = vpop.permute.xlu0 %1743
      %1745 = vrot.lane.b32.xlu0 %v1717, 125
      %v1746 = vpop.permute.xlu0 %1745
      %1747 = vrot.lane.b32.xlu0 %v1718, 125
      %v1748 = vpop.permute.xlu0 %1747
      %1749 = vrot.lane.b32.xlu0 %v1719, 125
      %v1750 = vpop.permute.xlu0 %1749
      %1751 = vrot.lane.b32.xlu0 %v1720, 125
      %v1752 = vpop.permute.xlu0 %1751
      %1753 = vrot.lane.b32.xlu0 %v1721, 125
      %v1754 = vpop.permute.xlu0 %1753
      %1755 = vrot.lane.b32.xlu0 %v1722, 125
      %v1756 = vpop.permute.xlu0 %1755
      %1757 = vrot.lane.b32.xlu0 %v1723, 125
      %v1758 = vpop.permute.xlu0 %1757
      %1759 = vrot.lane.b32.xlu0 %v1724, 125
      %v1760 = vpop.permute.xlu0 %1759
      %v1773 = vadd.f32 %v1653, %v1738
      %v1774 = vadd.f32 %v1654, %v1740
      %v1775 = vadd.f32 %v1655, %v1742
      %v1776 = vadd.f32 %v1656, %v1744
      %v1777 = vadd.f32 %v1657, %v1746
      %v1778 = vadd.f32 %v1658, %v1748
      %v1779 = vadd.f32 %v1659, %v1750
      %v1780 = vadd.f32 %v1660, %v1752
      %v1781 = vadd.f32 %v1661, %v1754
      %v1782 = vadd.f32 %v1662, %v1756
      %v1783 = vadd.f32 %v1663, %v1758
      %v1784 = vadd.f32 %v1664, %v1760
      %1787 = vrot.lane.b32.xlu0 %v1775, 9
      %v1788 = vpop.permute.xlu0 %1787
      %1789 = vrot.lane.b32.xlu0 %v1776, 9
      %v1790 = vpop.permute.xlu0 %1789
      %1795 = vrot.lane.b32.xlu0 %v1777, 18
      %v1796 = vpop.permute.xlu0 %1795
      %1797 = vrot.lane.b32.xlu0 %v1778, 18
      %v1798 = vpop.permute.xlu0 %1797
      %vm1801 = vcmask 72704
      %v1802 = vsel %vm1801, %v1773, %v1788
      %v1803 = vsel %vm1801, %v1774, %v1790
      %vm1804 = vcmask 146432
      %v1805 = vsel %vm1804, %v1802, %v1796
      %v1806 = vsel %vm1804, %v1803, %v1798
      %1809 = vrot.lane.b32.xlu0 %v1781, 9
      %v1810 = vpop.permute.xlu0 %1809
      %1811 = vrot.lane.b32.xlu0 %v1782, 9
      %v1812 = vpop.permute.xlu0 %1811
      %1817 = vrot.lane.b32.xlu0 %v1783, 18
      %v1818 = vpop.permute.xlu0 %1817
      %1819 = vrot.lane.b32.xlu0 %v1784, 18
      %v1820 = vpop.permute.xlu0 %1819
      %v1823 = vsel %vm1801, %v1779, %v1810
      %v1824 = vsel %vm1801, %v1780, %v1812
      %v1825 = vsel %vm1804, %v1823, %v1818
      %v1826 = vsel %vm1804, %v1824, %v1820
      %1828 = vset.pattern.permute.xlu0 0
      %1829 = vperm.xlu0 %1828, %v379
      %v1830 = vpop.permute.xlu0 %1829
      %1833 = vset.pattern.permute.xlu0 0
      %1834 = vperm.xlu0 %1833, %v380
      %v1835 = vpop.permute.xlu0 %1834
      %1838 = vset.pattern.permute.xlu0 0
      %1839 = vperm.xlu0 %1838, %v381
      %v1840 = vpop.permute.xlu0 %1839
      %1843 = vset.pattern.permute.xlu0 0
      %1844 = vperm.xlu0 %1843, %v382
      %v1845 = vpop.permute.xlu0 %1844
      %vm1847 = vcmask 261120
      %v1849 = vsel %vm1847, %v375, 0
      %v1852 = vsel %vm1847, %v376, 0
      %v1855 = vsel %vm1847, %v377, 0
      %v1858 = vsel %vm1847, %v378, 0
      %1860 = vmatpush.msra.mxu0 0.0
      %1861 = vmatpush.msra.mxu0 0.0
      %1862 = vmatpush.msra.mxu0 0.0
      %1863 = vmatpush.msra.mxu0 0.0
      %1864 = vmatpush.msra.mxu0 0.0
      %1865 = vmatpush.msra.mxu0 0.0
      %1866 = vmatpush.msra.mxu0 0.0
      %1867 = vmatpush.msra.mxu0 0.0
      %1868 = vmatpush.msra.mxu0 0.0
      %1869 = vmatpush.msra.mxu0 0.0
      %1870 = vmatpush.msra.mxu0 0.0
      %1871 = vmatpush.msra.mxu0 0.0
      %1872 = vmatpush.msra.mxu0 %v1826
      %1873 = vmatpush.msra.mxu0 %v1825
      %1874 = vmatpush.msra.mxu0 %v1806
      %1875 = vmatpush.msra.mxu0 %v1805
      %1876 = vmatmul.f32.gmra.mxu0 %v1849
      %v1877 = vpop.f32.mrf.mxu0
      %v1878 = vadd.f32 %v1830, %v1877
      %1879 = vmatmul.f32.gmra.mxu0 %v1852
      %v1880 = vpop.f32.mrf.mxu0
      %v1881 = vadd.f32 %v1835, %v1880
      %1882 = vmatmul.f32.gmra.mxu0 %v1855
      %v1883 = vpop.f32.mrf.mxu0
      %v1884 = vadd.f32 %v1840, %v1883
      %1885 = vmatmul.f32.gmra.mxu0 %v1858
      %v1886 = vpop.f32.mrf.mxu0
      %v1887 = vadd.f32 %v1845, %v1886
      %1888 = vdwg.mxu0
      %v1889 = vmax.f32 %v1878, 0.0
      %v1890 = vmax.f32 %v1881, 0.0
      %v1891 = vmax.f32 %v1884, 0.0
      %v1892 = vmax.f32 %v1887, 0.0
      %v1893 = vmul.f32 %v1889, %v383
      %v1894 = vmul.f32 %v1890, %v384
      %v1895 = vmul.f32 %v1891, %v385
      %v1896 = vmul.f32 %v1892, %v386
      %vm1897 = vcmask 220160
      %v1898 = vsel %vm1897, %v1893, 0.0
      %1899 = vadd.xlane.f32.xlu0 %v1898
      %v1900 = vpop.xlane.xlu0 %1899
      %v1901 = vsel %vm1897, %v1894, 0.0
      %1902 = vadd.xlane.f32.xlu0 %v1901
      %v1903 = vpop.xlane.xlu0 %1902
      %v1904 = vsel %vm1897, %v1895, 0.0
      %1905 = vadd.xlane.f32.xlu0 %v1904
      %v1906 = vpop.xlane.xlu0 %1905
      %v1907 = vsel %vm1897, %v1896, 0.0
      %1908 = vadd.xlane.f32.xlu0 %v1907
      %v1909 = vpop.xlane.xlu0 %1908
      %v1910 = vadd.f32 %v1900, %v1903
      %v1911 = vadd.f32 %v1910, %v1906
      %v1912 = vadd.f32 %v1911, %v1909
      %v1913 = vrot.slane %v1912, 4
      %v1914 = vadd.f32 %v1912, %v1913
      %v1915 = vrot.slane %v1914, 2
      %v1916 = vadd.f32 %v1914, %v1915
      %v1917 = vrot.slane %v1916, 1
      %v1918 = vadd.f32 %v1916, %v1917
      %v1919 = vadd.f32 %v1918, 0.0
      %1920 = vset.pattern.permute.xlu0 3
      %1921 = vperm.xlu0 %1920, %v351
      %v1922 = vpop.permute.xlu0 %1921
      %1924 = vset.pattern.permute.xlu0 3
      %1925 = vperm.xlu0 %1924, %v352
      %v1926 = vpop.permute.xlu0 %1925
      %1928 = vset.pattern.permute.xlu0 3
      %1929 = vperm.xlu0 %1928, %v353
      %v1930 = vpop.permute.xlu0 %1929
      %1932 = vset.pattern.permute.xlu0 3
      %1933 = vperm.xlu0 %1932, %v354
      %v1934 = vpop.permute.xlu0 %1933
      %1936 = vset.pattern.permute.xlu0 3
      %1937 = vperm.xlu0 %1936, %v355
      %v1938 = vpop.permute.xlu0 %1937
      %1940 = vset.pattern.permute.xlu0 3
      %1941 = vperm.xlu0 %1940, %v356
      %v1942 = vpop.permute.xlu0 %1941
      %1944 = vset.pattern.permute.xlu0 3
      %1945 = vperm.xlu0 %1944, %v357
      %v1946 = vpop.permute.xlu0 %1945
      %1948 = vset.pattern.permute.xlu0 3
      %1949 = vperm.xlu0 %1948, %v358
      %v1950 = vpop.permute.xlu0 %1949
      %v1952 = vmul.f32 %v1922, %v1039
      %v1953 = vmul.f32 %v1926, %v1040
      %v1954 = vmul.f32 %v1930, %v1041
      %v1955 = vmul.f32 %v1934, %v1042
      %v1956 = vmul.f32 %v1938, %v1039
      %v1957 = vmul.f32 %v1942, %v1040
      %v1958 = vmul.f32 %v1946, %v1041
      %v1959 = vmul.f32 %v1950, %v1042
      %1960 = vset.pattern.permute.xlu0 4
      %1961 = vperm.xlu0 %1960, %v351
      %v1962 = vpop.permute.xlu0 %1961
      %1964 = vset.pattern.permute.xlu0 4
      %1965 = vperm.xlu0 %1964, %v352
      %v1966 = vpop.permute.xlu0 %1965
      %1968 = vset.pattern.permute.xlu0 4
      %1969 = vperm.xlu0 %1968, %v353
      %v1970 = vpop.permute.xlu0 %1969
      %1972 = vset.pattern.permute.xlu0 4
      %1973 = vperm.xlu0 %1972, %v354
      %v1974 = vpop.permute.xlu0 %1973
      %1976 = vset.pattern.permute.xlu0 4
      %1977 = vperm.xlu0 %1976, %v355
      %v1978 = vpop.permute.xlu0 %1977
      %1980 = vset.pattern.permute.xlu0 4
      %1981 = vperm.xlu0 %1980, %v356
      %v1982 = vpop.permute.xlu0 %1981
      %1984 = vset.pattern.permute.xlu0 4
      %1985 = vperm.xlu0 %1984, %v357
      %v1986 = vpop.permute.xlu0 %1985
      %1988 = vset.pattern.permute.xlu0 4
      %1989 = vperm.xlu0 %1988, %v358
      %v1990 = vpop.permute.xlu0 %1989
      %v1992 = vmul.f32 %v1962, %v1043
      %v1993 = vmul.f32 %v1966, %v1044
      %v1994 = vmul.f32 %v1970, %v1045
      %v1995 = vmul.f32 %v1974, %v1046
      %v1996 = vmul.f32 %v1978, %v1043
      %v1997 = vmul.f32 %v1982, %v1044
      %v1998 = vmul.f32 %v1986, %v1045
      %v1999 = vmul.f32 %v1990, %v1046
      %v2000 = vadd.f32 %v1952, %v1992
      %v2001 = vadd.f32 %v1953, %v1993
      %v2002 = vadd.f32 %v1954, %v1994
      %v2003 = vadd.f32 %v1955, %v1995
      %v2004 = vadd.f32 %v1956, %v1996
      %v2005 = vadd.f32 %v1957, %v1997
      %v2006 = vadd.f32 %v1958, %v1998
      %v2007 = vadd.f32 %v1959, %v1999
      %2008 = vset.pattern.permute.xlu0 5
      %2009 = vperm.xlu0 %2008, %v351
      %v2010 = vpop.permute.xlu0 %2009
      %2012 = vset.pattern.permute.xlu0 5
      %2013 = vperm.xlu0 %2012, %v352
      %v2014 = vpop.permute.xlu0 %2013
      %2016 = vset.pattern.permute.xlu0 5
      %2017 = vperm.xlu0 %2016, %v353
      %v2018 = vpop.permute.xlu0 %2017
      %2020 = vset.pattern.permute.xlu0 5
      %2021 = vperm.xlu0 %2020, %v354
      %v2022 = vpop.permute.xlu0 %2021
      %2024 = vset.pattern.permute.xlu0 5
      %2025 = vperm.xlu0 %2024, %v355
      %v2026 = vpop.permute.xlu0 %2025
      %2028 = vset.pattern.permute.xlu0 5
      %2029 = vperm.xlu0 %2028, %v356
      %v2030 = vpop.permute.xlu0 %2029
      %2032 = vset.pattern.permute.xlu0 5
      %2033 = vperm.xlu0 %2032, %v357
      %v2034 = vpop.permute.xlu0 %2033
      %2036 = vset.pattern.permute.xlu0 5
      %2037 = vperm.xlu0 %2036, %v358
      %v2038 = vpop.permute.xlu0 %2037
      %v2040 = vadd.f32 %v2000, %v2010
      %v2041 = vadd.f32 %v2001, %v2014
      %v2042 = vadd.f32 %v2002, %v2018
      %v2043 = vadd.f32 %v2003, %v2022
      %v2044 = vadd.f32 %v2004, %v2026
      %v2045 = vadd.f32 %v2005, %v2030
      %v2046 = vadd.f32 %v2006, %v2034
      %v2047 = vadd.f32 %v2007, %v2038
      %v2048 = vmax.f32 %v2040, 0.0
      %v2049 = vmax.f32 %v2041, 0.0
      %v2050 = vmax.f32 %v2042, 0.0
      %v2051 = vmax.f32 %v2043, 0.0
      %v2052 = vmax.f32 %v2044, 0.0
      %v2053 = vmax.f32 %v2045, 0.0
      %v2054 = vmax.f32 %v2046, 0.0
      %v2055 = vmax.f32 %v2047, 0.0
      %v2057 = vsel %vm1263, %v2048, 0
      %v2060 = vsel %vm1263, %v2049, 0
      %v2063 = vsel %vm1263, %v2050, 0
      %v2066 = vsel %vm1263, %v2051, 0
      %v2069 = vsel %vm1263, %v2052, 0
      %v2072 = vsel %vm1263, %v2053, 0
      %v2075 = vsel %vm1263, %v2054, 0
      %v2078 = vsel %vm1263, %v2055, 0
      %2080 = vmatpush.msra.mxu0 0.0
      %2081 = vmatpush.msra.mxu0 0.0
      %2082 = vmatpush.msra.mxu0 0.0
      %2083 = vmatpush.msra.mxu0 0.0
      %2084 = vmatpush.msra.mxu0 0.0
      %2085 = vmatpush.msra.mxu0 0.0
      %2086 = vmatpush.msra.mxu0 0.0
      %2087 = vmatpush.msra.mxu0 0.0
      %2088 = vmatpush.msra.mxu0 %v350
      %2089 = vmatpush.msra.mxu0 %v349
      %2090 = vmatpush.msra.mxu0 %v348
      %2091 = vmatpush.msra.mxu0 %v347
      %2092 = vmatpush.msra.mxu0 %v346
      %2093 = vmatpush.msra.mxu0 %v345
      %2094 = vmatpush.msra.mxu0 %v344
      %2095 = vmatpush.msra.mxu0 %v343
      %2096 = vmatmul.f32.gmra.mxu0 %v2057
      %v2097 = vpop.f32.mrf.mxu0
      %v2098 = vadd.f32 0.0, %v2097
      %2099 = vmatmul.f32.gmra.mxu0 %v2060
      %v2100 = vpop.f32.mrf.mxu0
      %v2101 = vadd.f32 0.0, %v2100
      %2102 = vmatmul.f32.gmra.mxu0 %v2063
      %v2103 = vpop.f32.mrf.mxu0
      %v2104 = vadd.f32 0.0, %v2103
      %2105 = vmatmul.f32.gmra.mxu0 %v2066
      %v2106 = vpop.f32.mrf.mxu0
      %v2107 = vadd.f32 0.0, %v2106
      %2108 = vmatmul.f32.gmra.mxu0 %v2069
      %v2109 = vpop.f32.mrf.mxu0
      %v2110 = vadd.f32 0.0, %v2109
      %2111 = vmatmul.f32.gmra.mxu0 %v2072
      %v2112 = vpop.f32.mrf.mxu0
      %v2113 = vadd.f32 0.0, %v2112
      %2114 = vmatmul.f32.gmra.mxu0 %v2075
      %v2115 = vpop.f32.mrf.mxu0
      %v2116 = vadd.f32 0.0, %v2115
      %2117 = vmatmul.f32.gmra.mxu0 %v2078
      %v2118 = vpop.f32.mrf.mxu0
      %v2119 = vadd.f32 0.0, %v2118
      %2120 = vdwg.mxu0
      %2121 = vset.pattern.permute.xlu0 4
      %2122 = vperm.xlu0 %2121, %v363
      %v2123 = vpop.permute.xlu0 %2122
      %2125 = vset.pattern.permute.xlu0 4
      %2126 = vperm.xlu0 %2125, %v364
      %v2127 = vpop.permute.xlu0 %2126
      %2129 = vset.pattern.permute.xlu0 4
      %2130 = vperm.xlu0 %2129, %v365
      %v2131 = vpop.permute.xlu0 %2130
      %2133 = vset.pattern.permute.xlu0 4
      %2134 = vperm.xlu0 %2133, %v366
      %v2135 = vpop.permute.xlu0 %2134
      %2137 = vset.pattern.permute.xlu0 4
      %2138 = vperm.xlu0 %2137, %v367
      %v2139 = vpop.permute.xlu0 %2138
      %2141 = vset.pattern.permute.xlu0 4
      %2142 = vperm.xlu0 %2141, %v368
      %v2143 = vpop.permute.xlu0 %2142
      %2145 = vset.pattern.permute.xlu0 4
      %2146 = vperm.xlu0 %2145, %v369
      %v2147 = vpop.permute.xlu0 %2146
      %2149 = vset.pattern.permute.xlu0 4
      %2150 = vperm.xlu0 %2149, %v370
      %v2151 = vpop.permute.xlu0 %2150
      %v2153 = vmul.f32 %v2123, %v2098
      %v2154 = vmul.f32 %v2127, %v2101
      %v2155 = vmul.f32 %v2131, %v2104
      %v2156 = vmul.f32 %v2135, %v2107
      %v2157 = vmul.f32 %v2139, %v2110
      %v2158 = vmul.f32 %v2143, %v2113
      %v2159 = vmul.f32 %v2147, %v2116
      %v2160 = vmul.f32 %v2151, %v2119
      %2161 = vset.pattern.permute.xlu0 5
      %2162 = vperm.xlu0 %2161, %v363
      %v2163 = vpop.permute.xlu0 %2162
      %2165 = vset.pattern.permute.xlu0 5
      %2166 = vperm.xlu0 %2165, %v364
      %v2167 = vpop.permute.xlu0 %2166
      %2169 = vset.pattern.permute.xlu0 5
      %2170 = vperm.xlu0 %2169, %v365
      %v2171 = vpop.permute.xlu0 %2170
      %2173 = vset.pattern.permute.xlu0 5
      %2174 = vperm.xlu0 %2173, %v366
      %v2175 = vpop.permute.xlu0 %2174
      %2177 = vset.pattern.permute.xlu0 5
      %2178 = vperm.xlu0 %2177, %v367
      %v2179 = vpop.permute.xlu0 %2178
      %2181 = vset.pattern.permute.xlu0 5
      %2182 = vperm.xlu0 %2181, %v368
      %v2183 = vpop.permute.xlu0 %2182
      %2185 = vset.pattern.permute.xlu0 5
      %2186 = vperm.xlu0 %2185, %v369
      %v2187 = vpop.permute.xlu0 %2186
      %2189 = vset.pattern.permute.xlu0 5
      %2190 = vperm.xlu0 %2189, %v370
      %v2191 = vpop.permute.xlu0 %2190
      %v2193 = vmul.f32 %v2163, %v2098
      %v2194 = vmul.f32 %v2167, %v2101
      %v2195 = vmul.f32 %v2171, %v2104
      %v2196 = vmul.f32 %v2175, %v2107
      %v2197 = vmul.f32 %v2179, %v2110
      %v2198 = vmul.f32 %v2183, %v2113
      %v2199 = vmul.f32 %v2187, %v2116
      %v2200 = vmul.f32 %v2191, %v2119
      %2209 = vrot.lane.b32.xlu0 %v2193, 127
      %v2210 = vpop.permute.xlu0 %2209
      %2211 = vrot.lane.b32.xlu0 %v2194, 127
      %v2212 = vpop.permute.xlu0 %2211
      %2213 = vrot.lane.b32.xlu0 %v2195, 127
      %v2214 = vpop.permute.xlu0 %2213
      %2215 = vrot.lane.b32.xlu0 %v2196, 127
      %v2216 = vpop.permute.xlu0 %2215
      %2217 = vrot.lane.b32.xlu0 %v2197, 127
      %v2218 = vpop.permute.xlu0 %2217
      %2219 = vrot.lane.b32.xlu0 %v2198, 127
      %v2220 = vpop.permute.xlu0 %2219
      %2221 = vrot.lane.b32.xlu0 %v2199, 127
      %v2222 = vpop.permute.xlu0 %2221
      %2223 = vrot.lane.b32.xlu0 %v2200, 127
      %v2224 = vpop.permute.xlu0 %2223
      %v2233 = vadd.f32 %v2153, %v2210
      %v2234 = vadd.f32 %v2154, %v2212
      %v2235 = vadd.f32 %v2155, %v2214
      %v2236 = vadd.f32 %v2156, %v2216
      %v2237 = vadd.f32 %v2157, %v2218
      %v2238 = vadd.f32 %v2158, %v2220
      %v2239 = vadd.f32 %v2159, %v2222
      %v2240 = vadd.f32 %v2160, %v2224
      %2241 = vset.pattern.permute.xlu0 6
      %2242 = vperm.xlu0 %2241, %v363
      %v2243 = vpop.permute.xlu0 %2242
      %2245 = vset.pattern.permute.xlu0 6
      %2246 = vperm.xlu0 %2245, %v364
      %v2247 = vpop.permute.xlu0 %2246
      %2249 = vset.pattern.permute.xlu0 6
      %2250 = vperm.xlu0 %2249, %v365
      %v2251 = vpop.permute.xlu0 %2250
      %2253 = vset.pattern.permute.xlu0 6
      %2254 = vperm.xlu0 %2253, %v366
      %v2255 = vpop.permute.xlu0 %2254
      %2257 = vset.pattern.permute.xlu0 6
      %2258 = vperm.xlu0 %2257, %v367
      %v2259 = vpop.permute.xlu0 %2258
      %2261 = vset.pattern.permute.xlu0 6
      %2262 = vperm.xlu0 %2261, %v368
      %v2263 = vpop.permute.xlu0 %2262
      %2265 = vset.pattern.permute.xlu0 6
      %2266 = vperm.xlu0 %2265, %v369
      %v2267 = vpop.permute.xlu0 %2266
      %2269 = vset.pattern.permute.xlu0 6
      %2270 = vperm.xlu0 %2269, %v370
      %v2271 = vpop.permute.xlu0 %2270
      %v2273 = vmul.f32 %v2243, %v2098
      %v2274 = vmul.f32 %v2247, %v2101
      %v2275 = vmul.f32 %v2251, %v2104
      %v2276 = vmul.f32 %v2255, %v2107
      %v2277 = vmul.f32 %v2259, %v2110
      %v2278 = vmul.f32 %v2263, %v2113
      %v2279 = vmul.f32 %v2267, %v2116
      %v2280 = vmul.f32 %v2271, %v2119
      %2289 = vrot.lane.b32.xlu0 %v2273, 126
      %v2290 = vpop.permute.xlu0 %2289
      %2291 = vrot.lane.b32.xlu0 %v2274, 126
      %v2292 = vpop.permute.xlu0 %2291
      %2293 = vrot.lane.b32.xlu0 %v2275, 126
      %v2294 = vpop.permute.xlu0 %2293
      %2295 = vrot.lane.b32.xlu0 %v2276, 126
      %v2296 = vpop.permute.xlu0 %2295
      %2297 = vrot.lane.b32.xlu0 %v2277, 126
      %v2298 = vpop.permute.xlu0 %2297
      %2299 = vrot.lane.b32.xlu0 %v2278, 126
      %v2300 = vpop.permute.xlu0 %2299
      %2301 = vrot.lane.b32.xlu0 %v2279, 126
      %v2302 = vpop.permute.xlu0 %2301
      %2303 = vrot.lane.b32.xlu0 %v2280, 126
      %v2304 = vpop.permute.xlu0 %2303
      %v2313 = vadd.f32 %v2233, %v2290
      %v2314 = vadd.f32 %v2234, %v2292
      %v2315 = vadd.f32 %v2235, %v2294
      %v2316 = vadd.f32 %v2236, %v2296
      %v2317 = vadd.f32 %v2237, %v2298
      %v2318 = vadd.f32 %v2238, %v2300
      %v2319 = vadd.f32 %v2239, %v2302
      %v2320 = vadd.f32 %v2240, %v2304
      %2321 = vset.pattern.permute.xlu0 7
      %2322 = vperm.xlu0 %2321, %v363
      %v2323 = vpop.permute.xlu0 %2322
      %2325 = vset.pattern.permute.xlu0 7
      %2326 = vperm.xlu0 %2325, %v364
      %v2327 = vpop.permute.xlu0 %2326
      %2329 = vset.pattern.permute.xlu0 7
      %2330 = vperm.xlu0 %2329, %v365
      %v2331 = vpop.permute.xlu0 %2330
      %2333 = vset.pattern.permute.xlu0 7
      %2334 = vperm.xlu0 %2333, %v366
      %v2335 = vpop.permute.xlu0 %2334
      %2337 = vset.pattern.permute.xlu0 7
      %2338 = vperm.xlu0 %2337, %v367
      %v2339 = vpop.permute.xlu0 %2338
      %2341 = vset.pattern.permute.xlu0 7
      %2342 = vperm.xlu0 %2341, %v368
      %v2343 = vpop.permute.xlu0 %2342
      %2345 = vset.pattern.permute.xlu0 7
      %2346 = vperm.xlu0 %2345, %v369
      %v2347 = vpop.permute.xlu0 %2346
      %2349 = vset.pattern.permute.xlu0 7
      %2350 = vperm.xlu0 %2349, %v370
      %v2351 = vpop.permute.xlu0 %2350
      %v2353 = vmul.f32 %v2323, %v2098
      %v2354 = vmul.f32 %v2327, %v2101
      %v2355 = vmul.f32 %v2331, %v2104
      %v2356 = vmul.f32 %v2335, %v2107
      %v2357 = vmul.f32 %v2339, %v2110
      %v2358 = vmul.f32 %v2343, %v2113
      %v2359 = vmul.f32 %v2347, %v2116
      %v2360 = vmul.f32 %v2351, %v2119
      %2369 = vrot.lane.b32.xlu0 %v2353, 125
      %v2370 = vpop.permute.xlu0 %2369
      %2371 = vrot.lane.b32.xlu0 %v2354, 125
      %v2372 = vpop.permute.xlu0 %2371
      %2373 = vrot.lane.b32.xlu0 %v2355, 125
      %v2374 = vpop.permute.xlu0 %2373
      %2375 = vrot.lane.b32.xlu0 %v2356, 125
      %v2376 = vpop.permute.xlu0 %2375
      %2377 = vrot.lane.b32.xlu0 %v2357, 125
      %v2378 = vpop.permute.xlu0 %2377
      %2379 = vrot.lane.b32.xlu0 %v2358, 125
      %v2380 = vpop.permute.xlu0 %2379
      %2381 = vrot.lane.b32.xlu0 %v2359, 125
      %v2382 = vpop.permute.xlu0 %2381
      %2383 = vrot.lane.b32.xlu0 %v2360, 125
      %v2384 = vpop.permute.xlu0 %2383
      %v2393 = vadd.f32 %v2313, %v2370
      %v2394 = vadd.f32 %v2314, %v2372
      %v2395 = vadd.f32 %v2315, %v2374
      %v2396 = vadd.f32 %v2316, %v2376
      %v2397 = vadd.f32 %v2317, %v2378
      %v2398 = vadd.f32 %v2318, %v2380
      %v2399 = vadd.f32 %v2319, %v2382
      %v2400 = vadd.f32 %v2320, %v2384
      %2403 = vrot.lane.b32.xlu0 %v2395, 9
      %v2404 = vpop.permute.xlu0 %2403
      %2405 = vrot.lane.b32.xlu0 %v2396, 9
      %v2406 = vpop.permute.xlu0 %2405
      %v2409 = vsel %vm1801, %v2393, %v2404
      %v2410 = vsel %vm1801, %v2394, %v2406
      %2413 = vrot.lane.b32.xlu0 %v2399, 9
      %v2414 = vpop.permute.xlu0 %2413
      %2415 = vrot.lane.b32.xlu0 %v2400, 9
      %v2416 = vpop.permute.xlu0 %2415
      %v2419 = vsel %vm1801, %v2397, %v2414
      %v2420 = vsel %vm1801, %v2398, %v2416
      %2421 = vset.pattern.permute.xlu0 1
      %2422 = vperm.xlu0 %2421, %v379
      %v2423 = vpop.permute.xlu0 %2422
      %2425 = vset.pattern.permute.xlu0 1
      %2426 = vperm.xlu0 %2425, %v380
      %v2427 = vpop.permute.xlu0 %2426
      %2429 = vset.pattern.permute.xlu0 1
      %2430 = vperm.xlu0 %2429, %v381
      %v2431 = vpop.permute.xlu0 %2430
      %2433 = vset.pattern.permute.xlu0 1
      %2434 = vperm.xlu0 %2433, %v382
      %v2435 = vpop.permute.xlu0 %2434
      %2437 = vrot.lane.b32.xlu0 %v375, 96
      %v2438 = vpop.permute.xlu0 %2437
      %2439 = vrot.lane.b32.xlu0 %v376, 96
      %v2440 = vpop.permute.xlu0 %2439
      %2441 = vrot.lane.b32.xlu0 %v377, 96
      %v2442 = vpop.permute.xlu0 %2441
      %2443 = vrot.lane.b32.xlu0 %v378, 96
      %v2444 = vpop.permute.xlu0 %2443
      %v2445 = vsel %vm1847, %v2438, 0
      %v2447 = vsel %vm1847, %v2440, 0
      %v2449 = vsel %vm1847, %v2442, 0
      %v2451 = vsel %vm1847, %v2444, 0
      %2453 = vmatpush.msra.mxu0 0.0
      %2454 = vmatpush.msra.mxu0 0.0
      %2455 = vmatpush.msra.mxu0 0.0
      %2456 = vmatpush.msra.mxu0 0.0
      %2457 = vmatpush.msra.mxu0 0.0
      %2458 = vmatpush.msra.mxu0 0.0
      %2459 = vmatpush.msra.mxu0 0.0
      %2460 = vmatpush.msra.mxu0 0.0
      %2461 = vmatpush.msra.mxu0 0.0
      %2462 = vmatpush.msra.mxu0 0.0
      %2463 = vmatpush.msra.mxu0 0.0
      %2464 = vmatpush.msra.mxu0 0.0
      %2465 = vmatpush.msra.mxu0 %v2420
      %2466 = vmatpush.msra.mxu0 %v2419
      %2467 = vmatpush.msra.mxu0 %v2410
      %2468 = vmatpush.msra.mxu0 %v2409
      %2469 = vmatmul.f32.gmra.mxu0 %v2445
      %v2470 = vpop.f32.mrf.mxu0
      %v2471 = vadd.f32 %v2423, %v2470
      %2472 = vmatmul.f32.gmra.mxu0 %v2447
      %v2473 = vpop.f32.mrf.mxu0
      %v2474 = vadd.f32 %v2427, %v2473
      %2475 = vmatmul.f32.gmra.mxu0 %v2449
      %v2476 = vpop.f32.mrf.mxu0
      %v2477 = vadd.f32 %v2431, %v2476
      %2478 = vmatmul.f32.gmra.mxu0 %v2451
      %v2479 = vpop.f32.mrf.mxu0
      %v2480 = vadd.f32 %v2435, %v2479
      %2481 = vdwg.mxu0
      %v2482 = vmax.f32 %v2471, 0.0
      %v2483 = vmax.f32 %v2474, 0.0
      %v2484 = vmax.f32 %v2477, 0.0
      %v2485 = vmax.f32 %v2480, 0.0
      %2490 = vrot.lane.b32.xlu0 %v383, 101
      %v2491 = vpop.permute.xlu0 %2490
      %2492 = vrot.lane.b32.xlu0 %v384, 101
      %v2493 = vpop.permute.xlu0 %2492
      %2494 = vrot.lane.b32.xlu0 %v385, 101
      %v2495 = vpop.permute.xlu0 %2494
      %2496 = vrot.lane.b32.xlu0 %v386, 101
      %v2497 = vpop.permute.xlu0 %2496
      %v2502 = vmul.f32 %v2482, %v2491
      %v2503 = vmul.f32 %v2483, %v2493
      %v2504 = vmul.f32 %v2484, %v2495
      %v2505 = vmul.f32 %v2485, %v2497
      %v2506 = vsel %vm1804, %v2502, 0.0
      %2507 = vadd.xlane.f32.xlu0 %v2506
      %v2508 = vpop.xlane.xlu0 %2507
      %v2509 = vsel %vm1804, %v2503, 0.0
      %2510 = vadd.xlane.f32.xlu0 %v2509
      %v2511 = vpop.xlane.xlu0 %2510
      %v2512 = vsel %vm1804, %v2504, 0.0
      %2513 = vadd.xlane.f32.xlu0 %v2512
      %v2514 = vpop.xlane.xlu0 %2513
      %v2515 = vsel %vm1804, %v2505, 0.0
      %2516 = vadd.xlane.f32.xlu0 %v2515
      %v2517 = vpop.xlane.xlu0 %2516
      %v2518 = vadd.f32 %v2508, %v2511
      %v2519 = vadd.f32 %v2518, %v2514
      %v2520 = vadd.f32 %v2519, %v2517
      %v2521 = vrot.slane %v2520, 4
      %v2522 = vadd.f32 %v2520, %v2521
      %v2523 = vrot.slane %v2522, 2
      %v2524 = vadd.f32 %v2522, %v2523
      %v2525 = vrot.slane %v2524, 1
      %v2526 = vadd.f32 %v2524, %v2525
      %v2527 = vadd.f32 %v1919, %v2526
      %2528 = vset.pattern.permute.xlu0 6
      %2529 = vperm.xlu0 %2528, %v351
      %v2530 = vpop.permute.xlu0 %2529
      %2532 = vset.pattern.permute.xlu0 6
      %2533 = vperm.xlu0 %2532, %v352
      %v2534 = vpop.permute.xlu0 %2533
      %2536 = vset.pattern.permute.xlu0 6
      %2537 = vperm.xlu0 %2536, %v353
      %v2538 = vpop.permute.xlu0 %2537
      %2540 = vset.pattern.permute.xlu0 6
      %2541 = vperm.xlu0 %2540, %v354
      %v2542 = vpop.permute.xlu0 %2541
      %v2544 = vmul.f32 %v2530, %v1039
      %v2545 = vmul.f32 %v2534, %v1040
      %v2546 = vmul.f32 %v2538, %v1039
      %v2547 = vmul.f32 %v2542, %v1040
      %2548 = vset.pattern.permute.xlu0 7
      %2549 = vperm.xlu0 %2548, %v351
      %v2550 = vpop.permute.xlu0 %2549
      %2552 = vset.pattern.permute.xlu0 7
      %2553 = vperm.xlu0 %2552, %v352
      %v2554 = vpop.permute.xlu0 %2553
      %2556 = vset.pattern.permute.xlu0 7
      %2557 = vperm.xlu0 %2556, %v353
      %v2558 = vpop.permute.xlu0 %2557
      %2560 = vset.pattern.permute.xlu0 7
      %2561 = vperm.xlu0 %2560, %v354
      %v2562 = vpop.permute.xlu0 %2561
      %v2564 = vmul.f32 %v2550, %v1045
      %v2565 = vmul.f32 %v2554, %v1046
      %v2566 = vmul.f32 %v2558, %v1045
      %v2567 = vmul.f32 %v2562, %v1046
      %v2568 = vadd.f32 %v2544, %v2564
      %v2569 = vadd.f32 %v2545, %v2565
      %v2570 = vadd.f32 %v2546, %v2566
      %v2571 = vadd.f32 %v2547, %v2567
      %2572 = vset.pattern.permute.xlu0 8
      %2573 = vperm.xlu0 %2572, %v351
      %v2574 = vpop.permute.xlu0 %2573
      %2576 = vset.pattern.permute.xlu0 8
      %2577 = vperm.xlu0 %2576, %v352
      %v2578 = vpop.permute.xlu0 %2577
      %2580 = vset.pattern.permute.xlu0 8
      %2581 = vperm.xlu0 %2580, %v353
      %v2582 = vpop.permute.xlu0 %2581
      %2584 = vset.pattern.permute.xlu0 8
      %2585 = vperm.xlu0 %2584, %v354
      %v2586 = vpop.permute.xlu0 %2585
      %v2588 = vadd.f32 %v2568, %v2574
      %v2589 = vadd.f32 %v2569, %v2578
      %v2590 = vadd.f32 %v2570, %v2582
      %v2591 = vadd.f32 %v2571, %v2586
      %v2592 = vmax.f32 %v2588, 0.0
      %v2593 = vmax.f32 %v2589, 0.0
      %v2594 = vmax.f32 %v2590, 0.0
      %v2595 = vmax.f32 %v2591, 0.0
      %v2597 = vsel %vm1263, %v2592, 0
      %v2600 = vsel %vm1263, %v2593, 0
      %v2603 = vsel %vm1263, %v2594, 0
      %v2606 = vsel %vm1263, %v2595, 0
      %2608 = vmatpush.msra.mxu0 0.0
      %2609 = vmatpush.msra.mxu0 0.0
      %2610 = vmatpush.msra.mxu0 0.0
      %2611 = vmatpush.msra.mxu0 0.0
      %2612 = vmatpush.msra.mxu0 0.0
      %2613 = vmatpush.msra.mxu0 0.0
      %2614 = vmatpush.msra.mxu0 0.0
      %2615 = vmatpush.msra.mxu0 0.0
      %2616 = vmatpush.msra.mxu0 %v350
      %2617 = vmatpush.msra.mxu0 %v349
      %2618 = vmatpush.msra.mxu0 %v348
      %2619 = vmatpush.msra.mxu0 %v347
      %2620 = vmatpush.msra.mxu0 %v346
      %2621 = vmatpush.msra.mxu0 %v345
      %2622 = vmatpush.msra.mxu0 %v344
      %2623 = vmatpush.msra.mxu0 %v343
      %2624 = vmatmul.f32.gmra.mxu0 %v2597
      %v2625 = vpop.f32.mrf.mxu0
      %v2626 = vadd.f32 0.0, %v2625
      %2627 = vmatmul.f32.gmra.mxu0 %v2600
      %v2628 = vpop.f32.mrf.mxu0
      %v2629 = vadd.f32 0.0, %v2628
      %2630 = vmatmul.f32.gmra.mxu0 %v2603
      %v2631 = vpop.f32.mrf.mxu0
      %v2632 = vadd.f32 0.0, %v2631
      %2633 = vmatmul.f32.gmra.mxu0 %v2606
      %v2634 = vpop.f32.mrf.mxu0
      %v2635 = vadd.f32 0.0, %v2634
      %2636 = vdwg.mxu0
      %2637 = vset.pattern.permute.xlu0 8
      %2638 = vperm.xlu0 %2637, %v363
      %v2639 = vpop.permute.xlu0 %2638
      %2641 = vset.pattern.permute.xlu0 8
      %2642 = vperm.xlu0 %2641, %v364
      %v2643 = vpop.permute.xlu0 %2642
      %2645 = vset.pattern.permute.xlu0 8
      %2646 = vperm.xlu0 %2645, %v365
      %v2647 = vpop.permute.xlu0 %2646
      %2649 = vset.pattern.permute.xlu0 8
      %2650 = vperm.xlu0 %2649, %v366
      %v2651 = vpop.permute.xlu0 %2650
      %v2653 = vmul.f32 %v2639, %v2626
      %v2654 = vmul.f32 %v2643, %v2629
      %v2655 = vmul.f32 %v2647, %v2632
      %v2656 = vmul.f32 %v2651, %v2635
      %2657 = vset.pattern.permute.xlu0 9
      %2658 = vperm.xlu0 %2657, %v363
      %v2659 = vpop.permute.xlu0 %2658
      %2661 = vset.pattern.permute.xlu0 9
      %2662 = vperm.xlu0 %2661, %v364
      %v2663 = vpop.permute.xlu0 %2662
      %2665 = vset.pattern.permute.xlu0 9
      %2666 = vperm.xlu0 %2665, %v365
      %v2667 = vpop.permute.xlu0 %2666
      %2669 = vset.pattern.permute.xlu0 9
      %2670 = vperm.xlu0 %2669, %v366
      %v2671 = vpop.permute.xlu0 %2670
      %v2673 = vmul.f32 %v2659, %v2626
      %v2674 = vmul.f32 %v2663, %v2629
      %v2675 = vmul.f32 %v2667, %v2632
      %v2676 = vmul.f32 %v2671, %v2635
      %2681 = vrot.lane.b32.xlu0 %v2673, 127
      %v2682 = vpop.permute.xlu0 %2681
      %2683 = vrot.lane.b32.xlu0 %v2674, 127
      %v2684 = vpop.permute.xlu0 %2683
      %2685 = vrot.lane.b32.xlu0 %v2675, 127
      %v2686 = vpop.permute.xlu0 %2685
      %2687 = vrot.lane.b32.xlu0 %v2676, 127
      %v2688 = vpop.permute.xlu0 %2687
      %v2693 = vadd.f32 %v2653, %v2682
      %v2694 = vadd.f32 %v2654, %v2684
      %v2695 = vadd.f32 %v2655, %v2686
      %v2696 = vadd.f32 %v2656, %v2688
      %2697 = vset.pattern.permute.xlu0 10
      %2698 = vperm.xlu0 %2697, %v363
      %v2699 = vpop.permute.xlu0 %2698
      %2701 = vset.pattern.permute.xlu0 10
      %2702 = vperm.xlu0 %2701, %v364
      %v2703 = vpop.permute.xlu0 %2702
      %2705 = vset.pattern.permute.xlu0 10
      %2706 = vperm.xlu0 %2705, %v365
      %v2707 = vpop.permute.xlu0 %2706
      %2709 = vset.pattern.permute.xlu0 10
      %2710 = vperm.xlu0 %2709, %v366
      %v2711 = vpop.permute.xlu0 %2710
      %v2713 = vmul.f32 %v2699, %v2626
      %v2714 = vmul.f32 %v2703, %v2629
      %v2715 = vmul.f32 %v2707, %v2632
      %v2716 = vmul.f32 %v2711, %v2635
      %2721 = vrot.lane.b32.xlu0 %v2713, 126
      %v2722 = vpop.permute.xlu0 %2721
      %2723 = vrot.lane.b32.xlu0 %v2714, 126
      %v2724 = vpop.permute.xlu0 %2723
      %2725 = vrot.lane.b32.xlu0 %v2715, 126
      %v2726 = vpop.permute.xlu0 %2725
      %2727 = vrot.lane.b32.xlu0 %v2716, 126
      %v2728 = vpop.permute.xlu0 %2727
      %v2733 = vadd.f32 %v2693, %v2722
      %v2734 = vadd.f32 %v2694, %v2724
      %v2735 = vadd.f32 %v2695, %v2726
      %v2736 = vadd.f32 %v2696, %v2728
      %2737 = vset.pattern.permute.xlu0 11
      %2738 = vperm.xlu0 %2737, %v363
      %v2739 = vpop.permute.xlu0 %2738
      %2741 = vset.pattern.permute.xlu0 11
      %2742 = vperm.xlu0 %2741, %v364
      %v2743 = vpop.permute.xlu0 %2742
      %2745 = vset.pattern.permute.xlu0 11
      %2746 = vperm.xlu0 %2745, %v365
      %v2747 = vpop.permute.xlu0 %2746
      %2749 = vset.pattern.permute.xlu0 11
      %2750 = vperm.xlu0 %2749, %v366
      %v2751 = vpop.permute.xlu0 %2750
      %v2753 = vmul.f32 %v2739, %v2626
      %v2754 = vmul.f32 %v2743, %v2629
      %v2755 = vmul.f32 %v2747, %v2632
      %v2756 = vmul.f32 %v2751, %v2635
      %2761 = vrot.lane.b32.xlu0 %v2753, 125
      %v2762 = vpop.permute.xlu0 %2761
      %2763 = vrot.lane.b32.xlu0 %v2754, 125
      %v2764 = vpop.permute.xlu0 %2763
      %2765 = vrot.lane.b32.xlu0 %v2755, 125
      %v2766 = vpop.permute.xlu0 %2765
      %2767 = vrot.lane.b32.xlu0 %v2756, 125
      %v2768 = vpop.permute.xlu0 %2767
      %v2773 = vadd.f32 %v2733, %v2762
      %v2774 = vadd.f32 %v2734, %v2764
      %v2775 = vadd.f32 %v2735, %v2766
      %v2776 = vadd.f32 %v2736, %v2768
      %2777 = vset.pattern.permute.xlu0 2
      %2778 = vperm.xlu0 %2777, %v379
      %v2779 = vpop.permute.xlu0 %2778
      %2781 = vset.pattern.permute.xlu0 2
      %2782 = vperm.xlu0 %2781, %v380
      %v2783 = vpop.permute.xlu0 %2782
      %2785 = vset.pattern.permute.xlu0 2
      %2786 = vperm.xlu0 %2785, %v381
      %v2787 = vpop.permute.xlu0 %2786
      %2789 = vset.pattern.permute.xlu0 2
      %2790 = vperm.xlu0 %2789, %v382
      %v2791 = vpop.permute.xlu0 %2790
      %2793 = vrot.lane.b32.xlu0 %v375, 64
      %v2794 = vpop.permute.xlu0 %2793
      %2795 = vrot.lane.b32.xlu0 %v376, 64
      %v2796 = vpop.permute.xlu0 %2795
      %2797 = vrot.lane.b32.xlu0 %v377, 64
      %v2798 = vpop.permute.xlu0 %2797
      %2799 = vrot.lane.b32.xlu0 %v378, 64
      %v2800 = vpop.permute.xlu0 %2799
      %v2801 = vsel %vm1847, %v2794, 0
      %v2803 = vsel %vm1847, %v2796, 0
      %v2805 = vsel %vm1847, %v2798, 0
      %v2807 = vsel %vm1847, %v2800, 0
      %2809 = vmatpush.msra.mxu0 0.0
      %2810 = vmatpush.msra.mxu0 0.0
      %2811 = vmatpush.msra.mxu0 0.0
      %2812 = vmatpush.msra.mxu0 0.0
      %2813 = vmatpush.msra.mxu0 0.0
      %2814 = vmatpush.msra.mxu0 0.0
      %2815 = vmatpush.msra.mxu0 0.0
      %2816 = vmatpush.msra.mxu0 0.0
      %2817 = vmatpush.msra.mxu0 0.0
      %2818 = vmatpush.msra.mxu0 0.0
      %2819 = vmatpush.msra.mxu0 0.0
      %2820 = vmatpush.msra.mxu0 0.0
      %2821 = vmatpush.msra.mxu0 %v2776
      %2822 = vmatpush.msra.mxu0 %v2775
      %2823 = vmatpush.msra.mxu0 %v2774
      %2824 = vmatpush.msra.mxu0 %v2773
      %2825 = vmatmul.f32.gmra.mxu0 %v2801
      %v2826 = vpop.f32.mrf.mxu0
      %v2827 = vadd.f32 %v2779, %v2826
      %2828 = vmatmul.f32.gmra.mxu0 %v2803
      %v2829 = vpop.f32.mrf.mxu0
      %v2830 = vadd.f32 %v2783, %v2829
      %2831 = vmatmul.f32.gmra.mxu0 %v2805
      %v2832 = vpop.f32.mrf.mxu0
      %v2833 = vadd.f32 %v2787, %v2832
      %2834 = vmatmul.f32.gmra.mxu0 %v2807
      %v2835 = vpop.f32.mrf.mxu0
      %v2836 = vadd.f32 %v2791, %v2835
      %2837 = vdwg.mxu0
      %v2838 = vmax.f32 %v2827, 0.0
      %v2839 = vmax.f32 %v2830, 0.0
      %v2840 = vmax.f32 %v2833, 0.0
      %v2841 = vmax.f32 %v2836, 0.0
      %2842 = vrot.lane.b32.xlu0 %v383, 74
      %v2843 = vpop.permute.xlu0 %2842
      %2844 = vrot.lane.b32.xlu0 %v384, 74
      %v2845 = vpop.permute.xlu0 %2844
      %2846 = vrot.lane.b32.xlu0 %v385, 74
      %v2847 = vpop.permute.xlu0 %2846
      %2848 = vrot.lane.b32.xlu0 %v386, 74
      %v2849 = vpop.permute.xlu0 %2848
      %v2854 = vmul.f32 %v2838, %v2843
      %v2855 = vmul.f32 %v2839, %v2845
      %v2856 = vmul.f32 %v2840, %v2847
      %v2857 = vmul.f32 %v2841, %v2849
      %v2858 = vsel %vm1801, %v2854, 0.0
      %2859 = vadd.xlane.f32.xlu0 %v2858
      %v2860 = vpop.xlane.xlu0 %2859
      %v2861 = vsel %vm1801, %v2855, 0.0
      %2862 = vadd.xlane.f32.xlu0 %v2861
      %v2863 = vpop.xlane.xlu0 %2862
      %v2864 = vsel %vm1801, %v2856, 0.0
      %2865 = vadd.xlane.f32.xlu0 %v2864
      %v2866 = vpop.xlane.xlu0 %2865
      %v2867 = vsel %vm1801, %v2857, 0.0
      %2868 = vadd.xlane.f32.xlu0 %v2867
      %v2869 = vpop.xlane.xlu0 %2868
      %v2870 = vadd.f32 %v2860, %v2863
      %v2871 = vadd.f32 %v2870, %v2866
      %v2872 = vadd.f32 %v2871, %v2869
      %v2873 = vrot.slane %v2872, 4
      %v2874 = vadd.f32 %v2872, %v2873
      %v2875 = vrot.slane %v2874, 2
      %v2876 = vadd.f32 %v2874, %v2875
      %v2877 = vrot.slane %v2876, 1
      %v2878 = vadd.f32 %v2876, %v2877
      %v2879 = vadd.f32 %v2527, %v2878
      %2880 = vst [vmem:[%s325] sm:$0x1] %v2879
      %p2881 = scmp.lt.s32.totalorder %s20, 1
      %s2882 = scalar_select %p2881, %s20, 1
      %s2883 = scalar_lea.vmem %s9, %s2882
      // Predicated region
      $region57: #{_lambda_.1} parent=55 // pred_check
        %p2884 = pneg %p232
      $region58: #{_lambda_.1} parent=55 // pred_check_branch
        %2886 = sbr.rel (%p2884) target = $region60
      $region59: #{_lambda_.1} parent=55 // pred_region
        _
      $region60: #{_lambda_.1} parent=55 // pred_fallthru
        _
    $region56: #{_lambda_.1} parent=5 // pred_fallthru
      _
    %p2887 = scmp.le.s32.totalorder 2, %s15
    // Predicated region
    $region61: #{_lambda_.1} parent=5 // pred_check
      %p2888 = pneg %p2887
    $region62: #{_lambda_.1} parent=5 // pred_check_branch
      %2890 = sbr.rel (%p2888) target = $region64
    $region63: #{_lambda_.1} parent=5 // pred_region
      %s2891 = ssub.s32 %s15, 2
      // Predicated region
      $region65: #{_lambda_.1} parent=63 // pred_check
        %p2892 = pneg %p238
      $region66: #{_lambda_.1} parent=63 // pred_check_branch
        %2894 = sbr.rel (%p2892) target = $region68
      $region67: #{_lambda_.1} parent=63 // pred_region
        %p2895 = scmp.lt.s32.totalorder %s21, 1
        %s2896 = scalar_select %p2895, %s21, 1
        %s2897 = scalar_lea.vmem %s9, %s2896
      $region68: #{_lambda_.1} parent=63 // pred_fallthru
        _
    $region64: #{_lambda_.1} parent=5 // pred_fallthru
      _
  $region6: #{_lambda_.1} parent=0 // loop_footer
    %s19 = sadd.s32 1, %s15
  $region7: #{_lambda_.1} parent=0 // loop_footer_branch
    %14 = sbr.rel target = $region3
  $region8: #{_lambda_.1} parent=0 // loop_exit
    _

</llo_original>
